<compile_context>
chip_gen: v7x
topology: tpu7x:2x2x1
jax: 0.10.0
libtpu: 0.0.40
codegen_flags: <defaults>
</compile_context>

<pallas_src>
import math
import functools

import jax
import jax.numpy as jnp
from jax import lax
from jax.experimental import pallas as pl
from jax.experimental.pallas import tpu as pltpu

EPS = 1e-6
NEG_INF = -1e9

# ----------------------------------------------------------------------------
# Chip-aware knobs (fall back to conservative values if the query fails)
# ----------------------------------------------------------------------------
try:
    _VMEM_CAP_BYTES = int(pltpu.get_tpu_info().vmem_capacity_bytes)
except Exception:  # pragma: no cover - conservative fallback
    _VMEM_CAP_BYTES = 64 * 1024 * 1024
_VMEM_LIMIT_BYTES = int(min(_VMEM_CAP_BYTES * 3 // 4, 96 * 1024 * 1024))
_FFN_ROW_CAP = 1024 if _VMEM_CAP_BYTES >= 100 * 1024 * 1024 else 512


# ----------------------------------------------------------------------------
# In-kernel helpers
# ----------------------------------------------------------------------------
def _layer_norm(x, a, b):
    # torch LayerNorm from the reference: unbiased std (Bessel), eps added to std.
    d = x.shape[-1]
    mean = jnp.mean(x, axis=-1, keepdims=True)
    var = jnp.sum((x - mean) ** 2, axis=-1, keepdims=True) * (1.0 / (d - 1))
    inv = 1.0 / (jnp.sqrt(var) + EPS)        # exact; only (rows, 1) elements
    return a * (x - mean) * inv + b


def _attend_heads(attn_scr, q, k, v, bias, num_heads, d_k):
    # q: (S, D) bf16 (softmax scale pre-folded); k, v: (T, D) bf16;
    # bias: (S, T) or (1, T) additive f32.  Per-head output is written into the
    # f32 VMEM scratch `attn_scr` (S, D) -- no concat, no per-slice casts.
    cdt = q.dtype
    for h in range(num_heads):               # static unroll; pure 2-D MXU dots
        sl = slice(h * d_k, (h + 1) * d_k)
        s = lax.dot_general(q[:, sl], k[:, sl],
                            (((1,), (1,)), ((), ())),
                            preferred_element_type=jnp.float32) + bias
        m = jnp.max(s, axis=-1, keepdims=True)
        e = jnp.exp(s - m)                   # f32 softmax (VPU/EUP)
        p = e * pl.reciprocal(jnp.sum(e, axis=-1, keepdims=True), approx=True)
        attn_scr[:, sl] = jnp.dot(p.astype(cdt), v[:, sl],
                                  preferred_element_type=jnp.float32)


# ----------------------------------------------------------------------------
# Pallas kernels (one fused kernel per sublayer)
# ----------------------------------------------------------------------------
def _self_attn_kernel(x_ref, ln_a_ref, ln_b_ref, wqkv_ref, bqkv_ref,
                      wo_ref, bo_ref, bias_ref, o_ref, attn_scr, *, num_heads):
    x = x_ref[0]                                     # (S, D) f32
    d_model = x.shape[-1]
    d_k = d_model // num_heads
    cdt = wqkv_ref.dtype                             # MXU compute dtype (bf16)

    y = _layer_norm(x, ln_a_ref[...], ln_b_ref[...])
    # 1/sqrt(d_k) is already folded into the Q columns of wqkv/bqkv.
    qkv = (jnp.dot(y.astype(cdt), wqkv_ref[...],
                   preferred_element_type=jnp.float32)
           + bqkv_ref[...]).astype(cdt)              # single cast, bf16 temp
    q = qkv[:, :d_model]
    k = qkv[:, d_model:2 * d_model]
    v = qkv[:, 2 * d_model:]

    _attend_heads(attn_scr, q, k, v, bias_ref[0], num_heads, d_k)
    out = jnp.dot(attn_scr[...].astype(cdt), wo_ref[...],
                  preferred_element_type=jnp.float32) + bo_ref[...] + x
    o_ref[0] = out.astype(o_ref.dtype)


def _src_attn_kernel(x_ref, mem_ref, ln_a_ref, ln_b_ref, wq_ref, bq_ref,
                     wkv_ref, bkv_ref, wo_ref, bo_ref, bias_ref, o_ref,
                     attn_scr, *, num_heads):
    x = x_ref[0]                                     # (S, D) f32
    mem = mem_ref[0]                                 # (T, D) f32 (raw memory, no LN)
    d_model = x.shape[-1]
    d_k = d_model // num_heads
    cdt = wq_ref.dtype

    y = _layer_norm(x, ln_a_ref[...], ln_b_ref[...])
    # 1/sqrt(d_k) is already folded into wq/bq.
    q = (jnp.dot(y.astype(cdt), wq_ref[...],
                 preferred_element_type=jnp.float32) + bq_ref[...]).astype(cdt)
    kv = (jnp.dot(mem.astype(cdt), wkv_ref[...],
                  preferred_element_type=jnp.float32) + bkv_ref[...]).astype(cdt)
    k = kv[:, :d_model]
    v = kv[:, d_model:]

    # bias_ref[0] is (1, T): key-padding bias broadcast over queries in-kernel.
    _attend_heads(attn_scr, q, k, v, bias_ref[0], num_heads, d_k)
    out = jnp.dot(attn_scr[...].astype(cdt), wo_ref[...],
                  preferred_element_type=jnp.float32) + bo_ref[...] + x
    o_ref[0] = out.astype(o_ref.dtype)


def _ffn_kernel(x_ref, ln_a_ref, ln_b_ref, w1_ref, b1_ref, w2_ref, b2_ref, o_ref):
    x = x_ref[...]                                   # (rows, D) f32
    cdt = w1_ref.dtype
    y = _layer_norm(x, ln_a_ref[...], ln_b_ref[...])
    h = jnp.dot(y.astype(cdt), w1_ref[...],
                preferred_element_type=jnp.float32) + b1_ref[...]
    h = jnp.maximum(h, 0.0)
    out = jnp.dot(h.astype(cdt), w2_ref[...],
                  preferred_element_type=jnp.float32) + b2_ref[...] + x
    o_ref[...] = out.astype(o_ref.dtype)


# ----------------------------------------------------------------------------
# Wrappers (BlockSpecs / grids)
# ----------------------------------------------------------------------------
def _row_tile(n, cap):
    """Largest row-tile <= cap that divides n and keeps (8,128) tiling legal."""
    if n <= cap:
        return n
    for t in range(cap, 7, -1):
        if n % t == 0 and t % 8 == 0:
            return t
    return n


def _batch_or_const_map(nbatch):
    # Bias arrays may be batch-invariant (leading dim 1) -> constant index map,
    # i.e. a single block resident for the whole grid (no per-step DMA).
    if nbatch == 1:
        return lambda b: (0, 0, 0)
    return lambda b: (b, 0, 0)


def self_attention_sublayer(x, bias, p):
    """bias: additive f32 (Bt, S, S), Bt in {1, B}."""
    B, S, D = x.shape
    H = p["num_heads"]
    Bt = bias.shape[0]
    wbytes = p["wqkv_s"].dtype.itemsize
    cost = pl.CostEstimate(
        flops=int(2 * B * S * D * 3 * D + 4 * B * S * S * D + 2 * B * S * D * D),
        transcendentals=int(B * H * S * S),
        bytes_accessed=int(4 * (2 * B * S * D) + 4 * Bt * S * S + wbytes * 4 * D * D),
    )
    return pl.pallas_call(
        functools.partial(_self_attn_kernel, num_heads=H),
        out_shape=jax.ShapeDtypeStruct((B, S, D), jnp.float32),
        grid=(B,),
        in_specs=[
            pl.BlockSpec((1, S, D), lambda b: (b, 0, 0)),
            pl.BlockSpec((1, D), lambda b: (0, 0)),
            pl.BlockSpec((1, D), lambda b: (0, 0)),
            pl.BlockSpec((D, 3 * D), lambda b: (0, 0)),
            pl.BlockSpec((1, 3 * D), lambda b: (0, 0)),
            pl.BlockSpec((D, D), lambda b: (0, 0)),
            pl.BlockSpec((1, D), lambda b: (0, 0)),
            pl.BlockSpec((1, S, S), _batch_or_const_map(Bt)),
        ],
        out_specs=pl.BlockSpec((1, S, D), lambda b: (b, 0, 0)),
        scratch_shapes=[pltpu.VMEM((S, D), jnp.float32)],   # per-head output accum
        compiler_params=pltpu.CompilerParams(
            dimension_semantics=("parallel",),
            vmem_limit_bytes=_VMEM_LIMIT_BYTES),
        cost_estimate=cost,
    )(x, p["ln1_a"], p["ln1_b"], p["wqkv_s"], p["bqkv_s"],
      p["wo_s"], p["bo_s"], bias)


def src_attention_sublayer(x, memory, bias, p):
    """bias: additive f32 key-padding bias (Bs, 1, T), Bs in {1, B}."""
    B, S, D = x.shape
    T = memory.shape[1]
    H = p["num_heads"]
    Bs = bias.shape[0]
    wbytes = p["wq_c"].dtype.itemsize
    cost = pl.CostEstimate(
        flops=int(2 * B * S * D * D + 4 * B * T * D * D
                  + 4 * B * S * T * D + 2 * B * S * D * D),
        transcendentals=int(B * H * S * T),
        bytes_accessed=int(4 * (2 * B * S * D + B * T * D) + 4 * Bs * T
                           + wbytes * 4 * D * D),
    )
    return pl.pallas_call(
        functools.partial(_src_attn_kernel, num_heads=H),
        out_shape=jax.ShapeDtypeStruct((B, S, D), jnp.float32),
        grid=(B,),
        in_specs=[
            pl.BlockSpec((1, S, D), lambda b: (b, 0, 0)),
            pl.BlockSpec((1, T, D), lambda b: (b, 0, 0)),
            pl.BlockSpec((1, D), lambda b: (0, 0)),
            pl.BlockSpec((1, D), lambda b: (0, 0)),
            pl.BlockSpec((D, D), lambda b: (0, 0)),
            pl.BlockSpec((1, D), lambda b: (0, 0)),
            pl.BlockSpec((D, 2 * D), lambda b: (0, 0)),
            pl.BlockSpec((1, 2 * D), lambda b: (0, 0)),
            pl.BlockSpec((D, D), lambda b: (0, 0)),
            pl.BlockSpec((1, D), lambda b: (0, 0)),
            pl.BlockSpec((1, 1, T), _batch_or_const_map(Bs)),
        ],
        out_specs=pl.BlockSpec((1, S, D), lambda b: (b, 0, 0)),
        scratch_shapes=[pltpu.VMEM((S, D), jnp.float32)],
        compiler_params=pltpu.CompilerParams(
            dimension_semantics=("parallel",),
            vmem_limit_bytes=_VMEM_LIMIT_BYTES),
        cost_estimate=cost,
    )(x, memory, p["ln2_a"], p["ln2_b"], p["wq_c"], p["bq_c"],
      p["wkv_c"], p["bkv_c"], p["wo_c"], p["bo_c"], bias)


def ffn_sublayer(x, p):
    B, S, D = x.shape
    d_ff = p["w1"].shape[1]
    R = B * S
    tile = _row_tile(R, _FFN_ROW_CAP)
    x2 = x.reshape(R, D)
    wbytes = p["w1"].dtype.itemsize
    cost = pl.CostEstimate(
        flops=int(4 * R * D * d_ff),
        transcendentals=0,
        bytes_accessed=int(8 * R * D + wbytes * 2 * D * d_ff),
    )
    out = pl.pallas_call(
        _ffn_kernel,
        out_shape=jax.ShapeDtypeStruct((R, D), jnp.float32),
        grid=(R // tile,),
        in_specs=[
            pl.BlockSpec((tile, D), lambda i: (i, 0)),
            pl.BlockSpec((1, D), lambda i: (0, 0)),
            pl.BlockSpec((1, D), lambda i: (0, 0)),
            pl.BlockSpec((D, d_ff), lambda i: (0, 0)),
            pl.BlockSpec((1, d_ff), lambda i: (0, 0)),
            pl.BlockSpec((d_ff, D), lambda i: (0, 0)),
            pl.BlockSpec((1, D), lambda i: (0, 0)),
        ],
        out_specs=pl.BlockSpec((tile, D), lambda i: (i, 0)),
        compiler_params=pltpu.CompilerParams(
            dimension_semantics=("parallel",),
            vmem_limit_bytes=_VMEM_LIMIT_BYTES),
        cost_estimate=cost,
    )(x2, p["ln3_a"], p["ln3_b"], p["w1"], p["b1"], p["w2"], p["b2"])
    return out.reshape(B, S, D)


def decoder_layer(x, memory, src_mask, tgt_mask, p):
    """DecoderLayer.forward(x, memory, src_mask, tgt_mask) with dropout = identity.

    tgt_mask: (Bt, 1, S, S) or (Bt, S, S), Bt in {1, B}.
    src_mask: key-padding mask (Bs, 1, 1, T) or (Bs, 1, T), Bs in {1, B}.
    Masks -> small additive f32 bias tensors (no (B,S,S)/(B,S,T) materialization).
    """
    B, S, D = x.shape
    T = memory.shape[1]

    tm = jnp.reshape(tgt_mask, (tgt_mask.shape[0], S, S))
    tgt_bias = jnp.where(tm == 0, NEG_INF, 0.0).astype(jnp.float32)     # (Bt, S, S)

    sm = jnp.reshape(src_mask, (src_mask.shape[0], 1, T))
    src_bias = jnp.where(sm == 0, NEG_INF, 0.0).astype(jnp.float32)     # (Bs, 1, T)

    x = self_attention_sublayer(x, tgt_bias, p)          # x + self_attn(LN1(x))
    x = src_attention_sublayer(x, memory, src_bias, p)   # x + src_attn(LN2(x), m, m)
    x = ffn_sublayer(x, p)                                # x + FFN(LN3(x))
    return x


# ----------------------------------------------------------------------------
# Pure-JAX f32 reference (sanity check of the Pallas path)
# ----------------------------------------------------------------------------
def _ref_layer_norm(x, a, b):
    mean = jnp.mean(x, axis=-1, keepdims=True)
    var = jnp.sum((x - mean) ** 2, axis=-1, keepdims=True) / (x.shape[-1] - 1)
    return a * (x - mean) / (jnp.sqrt(var) + EPS) + b


def _ref_attention(q_in, k_in, v_in, mask, wq, bq, wk, bk, wv, bv, wo, bo, H):
    B, S, D = q_in.shape
    T = k_in.shape[1]
    dk = D // H
    hi = lax.Precision.HIGHEST
    q = (q_in @ wq + bq).reshape(B, S, H, dk).transpose(0, 2, 1, 3)
    k = (k_in @ wk + bk).reshape(B, T, H, dk).transpose(0, 2, 1, 3)
    v = (v_in @ wv + bv).reshape(B, T, H, dk).transpose(0, 2, 1, 3)
    scores = jnp.einsum("bhqd,bhkd->bhqk", q, k, precision=hi) / math.sqrt(dk)
    scores = jnp.where(mask == 0, NEG_INF, scores)
    pr = jax.nn.softmax(scores, axis=-1)
    a = jnp.einsum("bhqk,bhkd->bhqd", pr, v, precision=hi)
    a = a.transpose(0, 2, 1, 3).reshape(B, S, D)
    return a @ wo + bo


def _ref_decoder_layer(x, memory, src_mask, tgt_mask, p):
    H = p["num_heads"]
    y = _ref_layer_norm(x, p["ln1_a"], p["ln1_b"])
    x = x + _ref_attention(y, y, y, tgt_mask,
                           p["wq_s"], p["bq_s"], p["wk_s"], p["bk_s"],
                           p["wv_s"], p["bv_s"], p["wo_s"], p["bo_s"], H)
    y = _ref_layer_norm(x, p["ln2_a"], p["ln2_b"])
    x = x + _ref_attention(y, memory, memory, src_mask,
                           p["wq_c"], p["bq_c"], p["wk_c"], p["bk_c"],
                           p["wv_c"], p["bv_c"], p["wo_c"], p["bo_c"], H)
    y = _ref_layer_norm(x, p["ln3_a"], p["ln3_b"])
    h = jnp.maximum(y @ p["w1"] + p["b1"], 0.0)
    return x + (h @ p["w2"] + p["b2"])


# ----------------------------------------------------------------------------
# Parameters (f32 "torch-like" params + kernel-friendly fused/bf16 layout)
# ----------------------------------------------------------------------------
def init_params(key, d_model, num_heads, d_ff):
    ks = jax.random.split(key, 20)
    s = 0.05

    def w(k, din, dout):
        return s * jax.random.normal(k, (din, dout), jnp.float32)

    def b(k, dout):
        return s * jax.random.normal(k, (dout,), jnp.float32)

    ones = jnp.ones((d_model,), jnp.float32)
    zeros = jnp.zeros((d_model,), jnp.float32)
    return dict(
        num_heads=num_heads,
        # self-attention (canonical MultiHeadedAttention linears)
        wq_s=w(ks[0], d_model, d_model), bq_s=b(ks[1], d_model),
        wk_s=w(ks[2], d_model, d_model), bk_s=b(ks[3], d_model),
        wv_s=w(ks[4], d_model, d_model), bv_s=b(ks[5], d_model),
        wo_s=w(ks[6], d_model, d_model), bo_s=b(ks[7], d_model),
        # src-attention
        wq_c=w(ks[8], d_model, d_model), bq_c=b(ks[9], d_model),
        wk_c=w(ks[10], d_model, d_model), bk_c=b(ks[11], d_model),
        wv_c=w(ks[12], d_model, d_model), bv_c=b(ks[13], d_model),
        wo_c=w(ks[14], d_model, d_model), bo_c=b(ks[15], d_model),
        # position-wise FFN
        w1=w(ks[16], d_model, d_ff), b1=b(ks[17], d_ff),
        w2=w(ks[18], d_ff, d_model), b2=b(ks[19], d_model),
        # the 3 SublayerConnection LayerNorms
        ln1_a=ones, ln1_b=zeros, ln2_a=ones, ln2_b=zeros, ln3_a=ones, ln3_b=zeros,
    )


def prepare_pallas_params(p, compute_dtype=jnp.bfloat16):
    """Fuse QKV/KV weights, fold 1/sqrt(d_k) into the Q projections, cast MXU
    operands to bf16, reshape 1-D params to 2-D (lane-dense)."""
    D = p["wq_s"].shape[0]
    H = p["num_heads"]
    scale = 1.0 / math.sqrt(D // H)
    cd = compute_dtype
    f32 = jnp.float32
    return dict(
        num_heads=H,
        # self-attn: fused (D, 3D) QKV weight with softmax scale folded into Q cols
        wqkv_s=jnp.concatenate(
            [p["wq_s"] * scale, p["wk_s"], p["wv_s"]], axis=1).astype(cd),
        bqkv_s=jnp.concatenate(
            [p["bq_s"] * scale, p["bk_s"], p["bv_s"]]).reshape(1, 3 * D).astype(f32),
        wo_s=p["wo_s"].astype(cd), bo_s=p["bo_s"].reshape(1, D).astype(f32),
        # src-attn: scaled Q weight + fused (D, 2D) KV weight applied to memory
        wq_c=(p["wq_c"] * scale).astype(cd),
        bq_c=(p["bq_c"] * scale).reshape(1, D).astype(f32),
        wkv_c=jnp.concatenate([p["wk_c"], p["wv_c"]], axis=1).astype(cd),
        bkv_c=jnp.concatenate([p["bk_c"], p["bv_c"]]).reshape(1, 2 * D).astype(f32),
        wo_c=p["wo_c"].astype(cd), bo_c=p["bo_c"].reshape(1, D).astype(f32),
        # FFN
        w1=p["w1"].astype(cd), b1=p["b1"].reshape(1, -1).astype(f32),
        w2=p["w2"].astype(cd), b2=p["b2"].reshape(1, D).astype(f32),
        # LayerNorm params stay f32 (elementwise math kept in f32)
        ln1_a=p["ln1_a"].reshape(1, D), ln1_b=p["ln1_b"].reshape(1, D),
        ln2_a=p["ln2_a"].reshape(1, D), ln2_b=p["ln2_b"].reshape(1, D),
        ln3_a=p["ln3_a"].reshape(1, D), ln3_b=p["ln3_b"].reshape(1, D),
    )


if __name__ == "__main__":
    B, S, T, D, H, D_FF = 2, 8, 16, 32, 4, 64

    key = jax.random.PRNGKey(0)
    k_x, k_m, k_p = jax.random.split(key, 3)
    x = jax.random.normal(k_x, (B, S, D), jnp.float32)
    memory = jax.random.normal(k_m, (B, T, D), jnp.float32)

    # tgt_mask: shared causal mask (batch-invariant -> single (1,S,S) bias block);
    # src_mask: per-batch key padding (batch 1 masks its last 3 memory keys).
    tgt_mask = jnp.tril(jnp.ones((S, S), jnp.int32)).reshape(1, 1, S, S)
    src_mask = jnp.ones((B, 1, 1, T), jnp.int32)
    src_mask = src_mask.at[1, :, :, T - 3:].set(0)

    params = init_params(k_p, D, H, D_FF)
    pallas_params = prepare_pallas_params(params, compute_dtype=jnp.bfloat16)

    out = decoder_layer(x, memory, src_mask, tgt_mask, pallas_params)
    out = jax.block_until_ready(out)

    ref = _ref_decoder_layer(x, memory, src_mask, tgt_mask, params)
    # bf16 MXU operands with f32 accumulation vs. an f32 reference
    if not bool(jnp.allclose(out, ref, rtol=3e-2, atol=3e-2)):
        err = float(jnp.max(jnp.abs(out - ref)))
        raise AssertionError(f"Pallas DecoderLayer mismatch vs JAX reference "
                             f"(max abs err {err:.4e})")

    print("KERNEL_OK")
</pallas_src>

<mosaic_0001>
module attributes {stable_mosaic.version = 11 : i64} {
  func.func @_self_attn_kernel(%arg0: i32, %arg1: memref<1x8x32xf32, #tpu.memory_space<vmem>>, %arg2: memref<1x32xf32, #tpu.memory_space<vmem>>, %arg3: memref<1x32xf32, #tpu.memory_space<vmem>>, %arg4: memref<32x96xbf16, #tpu.memory_space<vmem>>, %arg5: memref<1x96xf32, #tpu.memory_space<vmem>>, %arg6: memref<32x32xbf16, #tpu.memory_space<vmem>>, %arg7: memref<1x32xf32, #tpu.memory_space<vmem>>, %arg8: memref<1x8x8xf32, #tpu.memory_space<vmem>>, %arg9: memref<1x8x32xf32, #tpu.memory_space<vmem>>, %arg10: memref<8x32xf32, #tpu.memory_space<vmem>>) attributes {dimension_semantics = [#tpu.dimension_semantics<parallel>], iteration_bounds = array<i64: 2>, scalar_prefetch = 0 : i64, scratch_operands = 1 : i64, tpu.core_type = #tpu.core_type<tc>, window_params = [{transform_indices = @transform_0, window_bounds = array<i64: 1, 8, 32>}, {pipeline_mode = #tpu.pipeline_mode<synchronous>, transform_indices = @transform_1, window_bounds = array<i64: 1, 32>}, {pipeline_mode = #tpu.pipeline_mode<synchronous>, transform_indices = @transform_2, window_bounds = array<i64: 1, 32>}, {pipeline_mode = #tpu.pipeline_mode<synchronous>, transform_indices = @transform_3, window_bounds = array<i64: 32, 96>}, {pipeline_mode = #tpu.pipeline_mode<synchronous>, transform_indices = @transform_4, window_bounds = array<i64: 1, 96>}, {pipeline_mode = #tpu.pipeline_mode<synchronous>, transform_indices = @transform_5, window_bounds = array<i64: 32, 32>}, {pipeline_mode = #tpu.pipeline_mode<synchronous>, transform_indices = @transform_6, window_bounds = array<i64: 1, 32>}, {pipeline_mode = #tpu.pipeline_mode<synchronous>, transform_indices = @transform_7, window_bounds = array<i64: 1, 8, 8>}, {transform_indices = @transform_8, window_bounds = array<i64: 1, 8, 32>}]} {
    %c0 = arith.constant 0 : index
    %c0_0 = arith.constant 0 : index
    %c0_1 = arith.constant 0 : index
    %0 = vector.load %arg1[%c0, %c0_0, %c0_1] : memref<1x8x32xf32, #tpu.memory_space<vmem>>, vector<1x8x32xf32>
    %1 = vector.shape_cast %0 : vector<1x8x32xf32> to vector<8x32xf32>
    %c0_2 = arith.constant 0 : index
    %c0_3 = arith.constant 0 : index
    %2 = vector.load %arg2[%c0_2, %c0_3] : memref<1x32xf32, #tpu.memory_space<vmem>>, vector<1x32xf32>
    %c0_4 = arith.constant 0 : index
    %c0_5 = arith.constant 0 : index
    %3 = vector.load %arg3[%c0_4, %c0_5] : memref<1x32xf32, #tpu.memory_space<vmem>>, vector<1x32xf32>
    %cst = arith.constant dense<0.000000e+00> : vector<8xf32>
    %4 = vector.multi_reduction <add>, %1, %cst [1] : vector<8x32xf32> to vector<8xf32>
    %5 = vector.shape_cast %4 : vector<8xf32> to vector<8x1xf32>
    %cst_6 = arith.constant 3.200000e+01 : f32
    %6 = vector.broadcast %cst_6 : f32 to vector<8x1xf32>
    %7 = arith.divf %5, %6 : vector<8x1xf32>
    %8 = vector.broadcast %7 : vector<8x1xf32> to vector<8x32xf32>
    %9 = arith.subf %1, %8 : vector<8x32xf32>
    %10 = arith.mulf %9, %9 : vector<8x32xf32>
    %cst_7 = arith.constant dense<0.000000e+00> : vector<8xf32>
    %11 = vector.multi_reduction <add>, %10, %cst_7 [1] : vector<8x32xf32> to vector<8xf32>
    %12 = vector.shape_cast %11 : vector<8xf32> to vector<8x1xf32>
    %cst_8 = arith.constant 0.0322580636 : f32
    %13 = vector.broadcast %cst_8 : f32 to vector<8x1xf32>
    %14 = arith.mulf %12, %13 : vector<8x1xf32>
    %15 = math.sqrt %14 : vector<8x1xf32>
    %cst_9 = arith.constant 9.99999997E-7 : f32
    %16 = vector.broadcast %cst_9 : f32 to vector<8x1xf32>
    %17 = arith.addf %15, %16 : vector<8x1xf32>
    %cst_10 = arith.constant 1.000000e+00 : f32
    %18 = vector.broadcast %cst_10 : f32 to vector<8x1xf32>
    %19 = arith.divf %18, %17 : vector<8x1xf32>
    %20 = vector.broadcast %7 : vector<8x1xf32> to vector<8x32xf32>
    %21 = arith.subf %1, %20 : vector<8x32xf32>
    %22 = vector.broadcast %2 : vector<1x32xf32> to vector<8x32xf32>
    %23 = arith.mulf %22, %21 : vector<8x32xf32>
    %24 = vector.broadcast %19 : vector<8x1xf32> to vector<8x32xf32>
    %25 = arith.mulf %23, %24 : vector<8x32xf32>
    %26 = vector.broadcast %3 : vector<1x32xf32> to vector<8x32xf32>
    %27 = arith.addf %25, %26 : vector<8x32xf32>
    %28 = arith.truncf %27 : vector<8x32xf32> to vector<8x32xbf16>
    %c0_11 = arith.constant 0 : index
    %c0_12 = arith.constant 0 : index
    %29 = vector.load %arg4[%c0_11, %c0_12] : memref<32x96xbf16, #tpu.memory_space<vmem>>, vector<32x96xbf16>
    %cst_13 = arith.constant dense<0.000000e+00> : vector<8x96xf32>
    %30 = tpu.matmul %28, %29, %cst_13 {dimension_numbers = #tpu.dot_dimension_numbers<[1], [0], [0], [1], [0, 0, 1, 1], [], []>} : vector<8x32xbf16>, vector<32x96xbf16>, vector<8x96xf32> -> vector<8x96xf32>
    %c0_14 = arith.constant 0 : index
    %c0_15 = arith.constant 0 : index
    %31 = vector.load %arg5[%c0_14, %c0_15] : memref<1x96xf32, #tpu.memory_space<vmem>>, vector<1x96xf32>
    %32 = vector.broadcast %31 : vector<1x96xf32> to vector<8x96xf32>
    %33 = arith.addf %30, %32 : vector<8x96xf32>
    %34 = arith.truncf %33 : vector<8x96xf32> to vector<8x96xbf16>
    %35 = vector.extract_strided_slice %34 {offsets = [0, 0], sizes = [8, 32], strides = [1, 1]} : vector<8x96xbf16> to vector<8x32xbf16>
    %36 = vector.extract_strided_slice %34 {offsets = [0, 32], sizes = [8, 32], strides = [1, 1]} : vector<8x96xbf16> to vector<8x32xbf16>
    %37 = vector.extract_strided_slice %34 {offsets = [0, 64], sizes = [8, 32], strides = [1, 1]} : vector<8x96xbf16> to vector<8x32xbf16>
    %c0_16 = arith.constant 0 : index
    %c0_17 = arith.constant 0 : index
    %c0_18 = arith.constant 0 : index
    %38 = vector.load %arg8[%c0_16, %c0_17, %c0_18] : memref<1x8x8xf32, #tpu.memory_space<vmem>>, vector<1x8x8xf32>
    %39 = vector.shape_cast %38 : vector<1x8x8xf32> to vector<8x8xf32>
    %40 = vector.extract_strided_slice %35 {offsets = [0, 0], sizes = [8, 8], strides = [1, 1]} : vector<8x32xbf16> to vector<8x8xbf16>
    %41 = vector.extract_strided_slice %36 {offsets = [0, 0], sizes = [8, 8], strides = [1, 1]} : vector<8x32xbf16> to vector<8x8xbf16>
    %cst_19 = arith.constant dense<0.000000e+00> : vector<8x8xf32>
    %42 = tpu.matmul %40, %41, %cst_19 {dimension_numbers = #tpu.dot_dimension_numbers<[1], [1], [0], [0], [0, 0, 1, 0], [], []>} : vector<8x8xbf16>, vector<8x8xbf16>, vector<8x8xf32> -> vector<8x8xf32>
    %43 = arith.addf %42, %39 : vector<8x8xf32>
    %cst_20 = arith.constant dense<0xFF800000> : vector<8xf32>
    %44 = vector.multi_reduction <maximumf>, %43, %cst_20 [1] : vector<8x8xf32> to vector<8xf32>
    %45 = vector.shape_cast %44 : vector<8xf32> to vector<8x1xf32>
    %46 = vector.broadcast %45 : vector<8x1xf32> to vector<8x8xf32>
    %47 = arith.subf %43, %46 : vector<8x8xf32>
    %48 = math.exp %47 : vector<8x8xf32>
    %cst_21 = arith.constant dense<0.000000e+00> : vector<8xf32>
    %49 = vector.multi_reduction <add>, %48, %cst_21 [1] : vector<8x8xf32> to vector<8xf32>
    %50 = vector.shape_cast %49 : vector<8xf32> to vector<8x1xf32>
    %51 = tpu.reciprocal %50 {approx = true} : vector<8x1xf32> -> vector<8x1xf32>
    %52 = vector.broadcast %51 : vector<8x1xf32> to vector<8x8xf32>
    %53 = arith.mulf %48, %52 : vector<8x8xf32>
    %54 = arith.truncf %53 : vector<8x8xf32> to vector<8x8xbf16>
    %55 = vector.extract_strided_slice %37 {offsets = [0, 0], sizes = [8, 8], strides = [1, 1]} : vector<8x32xbf16> to vector<8x8xbf16>
    %cst_22 = arith.constant dense<0.000000e+00> : vector<8x8xf32>
    %56 = tpu.matmul %54, %55, %cst_22 {dimension_numbers = #tpu.dot_dimension_numbers<[1], [0], [0], [1], [0, 0, 1, 1], [], []>} : vector<8x8xbf16>, vector<8x8xbf16>, vector<8x8xf32> -> vector<8x8xf32>
    %c0_23 = arith.constant 0 : index
    %c0_24 = arith.constant 0 : index
    %57 = vector.load %arg10[%c0_23, %c0_24] : memref<8x32xf32, #tpu.memory_space<vmem>>, vector<8x8xf32>
    tpu.vector_store %arg10[%c0_23, %c0_24], %56 {strides = array<i32>} : memref<8x32xf32, #tpu.memory_space<vmem>>, vector<8x8xf32>,
    %58 = vector.extract_strided_slice %35 {offsets = [0, 8], sizes = [8, 8], strides = [1, 1]} : vector<8x32xbf16> to vector<8x8xbf16>
    %59 = vector.extract_strided_slice %36 {offsets = [0, 8], sizes = [8, 8], strides = [1, 1]} : vector<8x32xbf16> to vector<8x8xbf16>
    %cst_25 = arith.constant dense<0.000000e+00> : vector<8x8xf32>
    %60 = tpu.matmul %58, %59, %cst_25 {dimension_numbers = #tpu.dot_dimension_numbers<[1], [1], [0], [0], [0, 0, 1, 0], [], []>} : vector<8x8xbf16>, vector<8x8xbf16>, vector<8x8xf32> -> vector<8x8xf32>
    %61 = arith.addf %60, %39 : vector<8x8xf32>
    %cst_26 = arith.constant dense<0xFF800000> : vector<8xf32>
    %62 = vector.multi_reduction <maximumf>, %61, %cst_26 [1] : vector<8x8xf32> to vector<8xf32>
    %63 = vector.shape_cast %62 : vector<8xf32> to vector<8x1xf32>
    %64 = vector.broadcast %63 : vector<8x1xf32> to vector<8x8xf32>
    %65 = arith.subf %61, %64 : vector<8x8xf32>
    %66 = math.exp %65 : vector<8x8xf32>
    %cst_27 = arith.constant dense<0.000000e+00> : vector<8xf32>
    %67 = vector.multi_reduction <add>, %66, %cst_27 [1] : vector<8x8xf32> to vector<8xf32>
    %68 = vector.shape_cast %67 : vector<8xf32> to vector<8x1xf32>
    %69 = tpu.reciprocal %68 {approx = true} : vector<8x1xf32> -> vector<8x1xf32>
    %70 = vector.broadcast %69 : vector<8x1xf32> to vector<8x8xf32>
    %71 = arith.mulf %66, %70 : vector<8x8xf32>
    %72 = arith.truncf %71 : vector<8x8xf32> to vector<8x8xbf16>
    %73 = vector.extract_strided_slice %37 {offsets = [0, 8], sizes = [8, 8], strides = [1, 1]} : vector<8x32xbf16> to vector<8x8xbf16>
    %cst_28 = arith.constant dense<0.000000e+00> : vector<8x8xf32>
    %74 = tpu.matmul %72, %73, %cst_28 {dimension_numbers = #tpu.dot_dimension_numbers<[1], [0], [0], [1], [0, 0, 1, 1], [], []>} : vector<8x8xbf16>, vector<8x8xbf16>, vector<8x8xf32> -> vector<8x8xf32>
    %c0_29 = arith.constant 0 : index
    %c8 = arith.constant 8 : index
    %75 = vector.load %arg10[%c0_29, %c8] : memref<8x32xf32, #tpu.memory_space<vmem>>, vector<8x8xf32>
    tpu.vector_store %arg10[%c0_29, %c8], %74 {strides = array<i32>} : memref<8x32xf32, #tpu.memory_space<vmem>>, vector<8x8xf32>,
    %76 = vector.extract_strided_slice %35 {offsets = [0, 16], sizes = [8, 8], strides = [1, 1]} : vector<8x32xbf16> to vector<8x8xbf16>
    %77 = vector.extract_strided_slice %36 {offsets = [0, 16], sizes = [8, 8], strides = [1, 1]} : vector<8x32xbf16> to vector<8x8xbf16>
    %cst_30 = arith.constant dense<0.000000e+00> : vector<8x8xf32>
    %78 = tpu.matmul %76, %77, %cst_30 {dimension_numbers = #tpu.dot_dimension_numbers<[1], [1], [0], [0], [0, 0, 1, 0], [], []>} : vector<8x8xbf16>, vector<8x8xbf16>, vector<8x8xf32> -> vector<8x8xf32>
    %79 = arith.addf %78, %39 : vector<8x8xf32>
    %cst_31 = arith.constant dense<0xFF800000> : vector<8xf32>
    %80 = vector.multi_reduction <maximumf>, %79, %cst_31 [1] : vector<8x8xf32> to vector<8xf32>
    %81 = vector.shape_cast %80 : vector<8xf32> to vector<8x1xf32>
    %82 = vector.broadcast %81 : vector<8x1xf32> to vector<8x8xf32>
    %83 = arith.subf %79, %82 : vector<8x8xf32>
    %84 = math.exp %83 : vector<8x8xf32>
    %cst_32 = arith.constant dense<0.000000e+00> : vector<8xf32>
    %85 = vector.multi_reduction <add>, %84, %cst_32 [1] : vector<8x8xf32> to vector<8xf32>
    %86 = vector.shape_cast %85 : vector<8xf32> to vector<8x1xf32>
    %87 = tpu.reciprocal %86 {approx = true} : vector<8x1xf32> -> vector<8x1xf32>
    %88 = vector.broadcast %87 : vector<8x1xf32> to vector<8x8xf32>
    %89 = arith.mulf %84, %88 : vector<8x8xf32>
    %90 = arith.truncf %89 : vector<8x8xf32> to vector<8x8xbf16>
    %91 = vector.extract_strided_slice %37 {offsets = [0, 16], sizes = [8, 8], strides = [1, 1]} : vector<8x32xbf16> to vector<8x8xbf16>
    %cst_33 = arith.constant dense<0.000000e+00> : vector<8x8xf32>
    %92 = tpu.matmul %90, %91, %cst_33 {dimension_numbers = #tpu.dot_dimension_numbers<[1], [0], [0], [1], [0, 0, 1, 1], [], []>} : vector<8x8xbf16>, vector<8x8xbf16>, vector<8x8xf32> -> vector<8x8xf32>
    %c0_34 = arith.constant 0 : index
    %c16 = arith.constant 16 : index
    %93 = vector.load %arg10[%c0_34, %c16] : memref<8x32xf32, #tpu.memory_space<vmem>>, vector<8x8xf32>
    tpu.vector_store %arg10[%c0_34, %c16], %92 {strides = array<i32>} : memref<8x32xf32, #tpu.memory_space<vmem>>, vector<8x8xf32>,
    %94 = vector.extract_strided_slice %35 {offsets = [0, 24], sizes = [8, 8], strides = [1, 1]} : vector<8x32xbf16> to vector<8x8xbf16>
    %95 = vector.extract_strided_slice %36 {offsets = [0, 24], sizes = [8, 8], strides = [1, 1]} : vector<8x32xbf16> to vector<8x8xbf16>
    %cst_35 = arith.constant dense<0.000000e+00> : vector<8x8xf32>
    %96 = tpu.matmul %94, %95, %cst_35 {dimension_numbers = #tpu.dot_dimension_numbers<[1], [1], [0], [0], [0, 0, 1, 0], [], []>} : vector<8x8xbf16>, vector<8x8xbf16>, vector<8x8xf32> -> vector<8x8xf32>
    %97 = arith.addf %96, %39 : vector<8x8xf32>
    %cst_36 = arith.constant dense<0xFF800000> : vector<8xf32>
    %98 = vector.multi_reduction <maximumf>, %97, %cst_36 [1] : vector<8x8xf32> to vector<8xf32>
    %99 = vector.shape_cast %98 : vector<8xf32> to vector<8x1xf32>
    %100 = vector.broadcast %99 : vector<8x1xf32> to vector<8x8xf32>
    %101 = arith.subf %97, %100 : vector<8x8xf32>
    %102 = math.exp %101 : vector<8x8xf32>
    %cst_37 = arith.constant dense<0.000000e+00> : vector<8xf32>
    %103 = vector.multi_reduction <add>, %102, %cst_37 [1] : vector<8x8xf32> to vector<8xf32>
    %104 = vector.shape_cast %103 : vector<8xf32> to vector<8x1xf32>
    %105 = tpu.reciprocal %104 {approx = true} : vector<8x1xf32> -> vector<8x1xf32>
    %106 = vector.broadcast %105 : vector<8x1xf32> to vector<8x8xf32>
    %107 = arith.mulf %102, %106 : vector<8x8xf32>
    %108 = arith.truncf %107 : vector<8x8xf32> to vector<8x8xbf16>
    %109 = vector.extract_strided_slice %37 {offsets = [0, 24], sizes = [8, 8], strides = [1, 1]} : vector<8x32xbf16> to vector<8x8xbf16>
    %cst_38 = arith.constant dense<0.000000e+00> : vector<8x8xf32>
    %110 = tpu.matmul %108, %109, %cst_38 {dimension_numbers = #tpu.dot_dimension_numbers<[1], [0], [0], [1], [0, 0, 1, 1], [], []>} : vector<8x8xbf16>, vector<8x8xbf16>, vector<8x8xf32> -> vector<8x8xf32>
    %c0_39 = arith.constant 0 : index
    %c24 = arith.constant 24 : index
    %111 = vector.load %arg10[%c0_39, %c24] : memref<8x32xf32, #tpu.memory_space<vmem>>, vector<8x8xf32>
    tpu.vector_store %arg10[%c0_39, %c24], %110 {strides = array<i32>} : memref<8x32xf32, #tpu.memory_space<vmem>>, vector<8x8xf32>,
    %c0_40 = arith.constant 0 : index
    %c0_41 = arith.constant 0 : index
    %112 = vector.load %arg10[%c0_40, %c0_41] : memref<8x32xf32, #tpu.memory_space<vmem>>, vector<8x32xf32>
    %113 = arith.truncf %112 : vector<8x32xf32> to vector<8x32xbf16>
    %c0_42 = arith.constant 0 : index
    %c0_43 = arith.constant 0 : index
    %114 = vector.load %arg6[%c0_42, %c0_43] : memref<32x32xbf16, #tpu.memory_space<vmem>>, vector<32x32xbf16>
    %cst_44 = arith.constant dense<0.000000e+00> : vector<8x32xf32>
    %115 = tpu.matmul %113, %114, %cst_44 {dimension_numbers = #tpu.dot_dimension_numbers<[1], [0], [0], [1], [0, 0, 1, 1], [], []>} : vector<8x32xbf16>, vector<32x32xbf16>, vector<8x32xf32> -> vector<8x32xf32>
    %c0_45 = arith.constant 0 : index
    %c0_46 = arith.constant 0 : index
    %116 = vector.load %arg7[%c0_45, %c0_46] : memref<1x32xf32, #tpu.memory_space<vmem>>, vector<1x32xf32>
    %117 = vector.broadcast %116 : vector<1x32xf32> to vector<8x32xf32>
    %118 = arith.addf %115, %117 : vector<8x32xf32>
    %119 = arith.addf %118, %1 : vector<8x32xf32>
    %c0_47 = arith.constant 0 : index
    %c0_48 = arith.constant 0 : index
    %c0_49 = arith.constant 0 : index
    %120 = vector.load %arg9[%c0_47, %c0_48, %c0_49] : memref<1x8x32xf32, #tpu.memory_space<vmem>>, vector<1x8x32xf32>
    %121 = vector.shape_cast %120 : vector<1x8x32xf32> to vector<8x32xf32>
    %122 = vector.shape_cast %119 : vector<8x32xf32> to vector<1x8x32xf32>
    tpu.vector_store %arg9[%c0_47, %c0_48, %c0_49], %122 {strides = array<i32>} : memref<1x8x32xf32, #tpu.memory_space<vmem>>, vector<1x8x32xf32>,
    return
  }
  func.func @transform_0(%arg0: i32) -> (i32, i32, i32) {
    %c0_i32 = arith.constant 0 : i32
    %c0_i32_0 = arith.constant 0 : i32
    %c0_i32_1 = arith.constant 0 : i32
    return %arg0, %c0_i32, %c0_i32_0 : i32, i32, i32
  }
  func.func @transform_1(%arg0: i32) -> (i32, i32) {
    %c0_i32 = arith.constant 0 : i32
    %c0_i32_0 = arith.constant 0 : i32
    %c0_i32_1 = arith.constant 0 : i32
    return %c0_i32, %c0_i32_0 : i32, i32
  }
  func.func @transform_2(%arg0: i32) -> (i32, i32) {
    %c0_i32 = arith.constant 0 : i32
    %c0_i32_0 = arith.constant 0 : i32
    %c0_i32_1 = arith.constant 0 : i32
    return %c0_i32, %c0_i32_0 : i32, i32
  }
  func.func @transform_3(%arg0: i32) -> (i32, i32) {
    %c0_i32 = arith.constant 0 : i32
    %c0_i32_0 = arith.constant 0 : i32
    %c0_i32_1 = arith.constant 0 : i32
    return %c0_i32, %c0_i32_0 : i32, i32
  }
  func.func @transform_4(%arg0: i32) -> (i32, i32) {
    %c0_i32 = arith.constant 0 : i32
    %c0_i32_0 = arith.constant 0 : i32
    %c0_i32_1 = arith.constant 0 : i32
    return %c0_i32, %c0_i32_0 : i32, i32
  }
  func.func @transform_5(%arg0: i32) -> (i32, i32) {
    %c0_i32 = arith.constant 0 : i32
    %c0_i32_0 = arith.constant 0 : i32
    %c0_i32_1 = arith.constant 0 : i32
    return %c0_i32, %c0_i32_0 : i32, i32
  }
  func.func @transform_6(%arg0: i32) -> (i32, i32) {
    %c0_i32 = arith.constant 0 : i32
    %c0_i32_0 = arith.constant 0 : i32
    %c0_i32_1 = arith.constant 0 : i32
    return %c0_i32, %c0_i32_0 : i32, i32
  }
  func.func @transform_7(%arg0: i32) -> (i32, i32, i32) {
    %c0_i32 = arith.constant 0 : i32
    %c0_i32_0 = arith.constant 0 : i32
    %c0_i32_1 = arith.constant 0 : i32
    %c0_i32_2 = arith.constant 0 : i32
    return %c0_i32, %c0_i32_0, %c0_i32_1 : i32, i32, i32
  }
  func.func @transform_8(%arg0: i32) -> (i32, i32, i32) {
    %c0_i32 = arith.constant 0 : i32
    %c0_i32_0 = arith.constant 0 : i32
    %c0_i32_1 = arith.constant 0 : i32
    return %arg0, %c0_i32, %c0_i32_0 : i32, i32, i32
  }
}

</mosaic_0001>

<llo_original>
// kernel: tpu_custom_call.1
$region0: #{tpu_custom_call.1}
  #allocation0 [shape = 'u32[]', space=smem, size = 0x4, offset = 0x4, fixed_abs, tag = 'smem constant byte address 0x4 - core index']
  #allocation1 [shape = 'u32[144,128]{1,0:T(1,128)}', space=vmem, size = 0x12000, scoped, tag = 'internal scratch']
  #allocation2 [shape = 'f32[8,32]{1,0:T(8,128)}', space=vmem, size = 0x1000, scoped, tag = 'scratch operand']
  %s0 = inlined_call_operand.hbm [shape: f32[2,8,32], index: 0, kind: input, shape index: {}]
  %s1 = inlined_call_operand.vmem [shape: f32[1,32], index: 1, kind: input, shape index: {}]
  %s2 = inlined_call_operand.vmem [shape: f32[1,32], index: 2, kind: input, shape index: {}]
  %s3 = inlined_call_operand.hbm [shape: bf16[32,96], index: 3, kind: input, shape index: {}]
  %s4 = inlined_call_operand.hbm [shape: f32[1,96], index: 4, kind: input, shape index: {}]
  %s5 = inlined_call_operand.vmem [shape: bf16[32,32], index: 5, kind: input, shape index: {}]
  %s6 = inlined_call_operand.hbm [shape: f32[1,32], index: 6, kind: input, shape index: {}]
  %s7 = inlined_call_operand.vmem [shape: f32[1,8,8], index: 7, kind: input, shape index: {}]
  %s8 = inlined_call_operand.hbm [shape: f32[2,8,32], index: 8, kind: output, shape index: {}]
  %s9 = sld [smem:[#allocation0]]
  $region81: #{tpu_custom_call.1} parent=0
    _
  %s11 = ssub.s32 1, %s9
  %s12 = scalar_select 0, %s11, %s9
  $region1: #{tpu_custom_call.1} parent=0
    #allocation3 [shape = 'u8[8192]{0}', space=vmem, size = 0x2000, scoped, tag = 'input window, operand 0']
    #allocation4 [shape = 's32[2]{0}', space=sflag, size = 0x8, scoped, tag = 'scoped memory for tpu_custom_call.1']
    #allocation5 [shape = 's32[2]{0}', space=sflag, size = 0x8, scoped, tag = 'scoped memory for tpu_custom_call.1']
    #allocation6 [shape = 'u8[8192]{0}', space=vmem, size = 0x2000, scoped, tag = 'input window, operand 3, single buffered']
    #allocation7 [shape = 's32[1]{0}', space=sflag, size = 0x4, scoped, tag = 'scoped memory for tpu_custom_call.1']
    #allocation8 [shape = 'u8[512]{0}', space=vmem, size = 0x400, scoped, tag = 'input window, operand 4, single buffered']
    #allocation9 [shape = 'u8[512]{0}', space=vmem, size = 0x400, scoped, tag = 'input window, operand 6, single buffered']
    #allocation10 [shape = 's32[1]{0}', space=sflag, size = 0x4, scoped, tag = 'scoped memory for tpu_custom_call.1']
    #allocation11 [shape = 'u8[8192]{0}', space=vmem, size = 0x2000, scoped, tag = 'output window, operand 0']
    %13 = vsyncpa [#allocation4], 0
    %s14 = scalar_lea.sflag [#allocation4], 1
    %15 = vsyncpa %s14, 0
    %16 = vsyncpa [#allocation7], 0
    %17 = vsyncpa [#allocation10], 0
    %18 = vsyncpa [#allocation5], 0
    %s19 = scalar_lea.sflag [#allocation5], 1
    %20 = vsyncpa %s19, 0
    loop: start=0, step=1, limit=4
    $region2: #{tpu_custom_call.1} parent=1 // loop_pre_header
      _
    $region3: #{tpu_custom_call.1} parent=1 // loop_header
      %s22 = sphi 0, %s26
      %p23 = scmp.ge.s32.totalorder %s22, 4
      %s32 = sphi 0, %s34
      %s35 = sphi 0, %s32
      %s36 = sphi 0, %s35
      %s52 = sphi 0, %s36
      %s56 = sphi 0, %s56
      %s58 = sphi 0, %s56
      %s59 = sphi 0, %s58
      %s73 = sphi 0, %s59
      %s77 = sphi 0, %s77
      %s79 = sphi 0, %s77
      %s80 = sphi 0, %s79
      %s94 = sphi 0, %s80
      %s98 = sphi 0, %s98
      %s100 = sphi 0, %s98
      %s101 = sphi 0, %s100
      %s115 = sphi 0, %s101
      %s119 = sphi 0, %s119
      %s121 = sphi 0, %s119
      %s122 = sphi 0, %s121
      %s136 = sphi 0, %s122
      %s140 = sphi 0, %s140
      %s142 = sphi 0, %s140
      %s143 = sphi 0, %s142
      %s157 = sphi 0, %s143
      %s161 = sphi 0, %s161
      %s163 = sphi 0, %s161
      %s164 = sphi 0, %s163
      %s178 = sphi 0, %s164
      %s182 = sphi 0, %s182
      %s184 = sphi 0, %s182
      %s185 = sphi 0, %s184
      %s199 = sphi 0, %s185
      %s205 = sphi 0, %s207
      %s208 = sphi 0, %s205
      %s209 = sphi 0, %s208
      %s225 = sphi 0, %s209
    $region4: #{tpu_custom_call.1} parent=1 // loop_header_branch
      %25 = sbr.rel (%p23) target = $region8
    $region5: #{tpu_custom_call.1} parent=1 // loop_body
      %s27 = ssub.s32 %s22, 1
      %s28 = ssub.s32 %s22, 2
      %s29 = sadd.s32 %s22, 1
      %s30 = ssub.s32 %s22, %s29
      %p31 = scmp.eq.s32.totalorder %s30, 0
      %s33 = sadd.s32 %s32, 1
      %s34 = scalar_select %p31, %s32, %s33
      %p37 = pneg %p31
      %p38 = scmp.eq.s32.totalorder %s22, 1
      %p39 = por %p37, %p38
      %p40 = scmp.ne.s32.totalorder %s32, %s35
      %p41 = scmp.eq.s32.totalorder %s22, 0
      %p42 = por %p40, %p41
      %p43 = scmp.ne.s32.totalorder %s32, %s35
      %p44 = scmp.eq.s32.totalorder %s27, 1
      %p45 = por %p43, %p44
      %p46 = scmp.ne.s32.totalorder %s35, %s36
      %p47 = scmp.eq.s32.totalorder %s27, 0
      %p48 = por %p46, %p47
      %p49 = scmp.ne.s32.totalorder %s35, %s36
      %p50 = scmp.eq.s32.totalorder %s28, 1
      %p51 = por %p49, %p50
      %p53 = scmp.ne.s32.totalorder %s36, %s52
      %p54 = scmp.eq.s32.totalorder %s28, 0
      %p55 = por %p53, %p54
      %s57 = sadd.s32 %s56, 1
      %p60 = scmp.eq.s32.totalorder %s22, 1
      %p61 = scmp.ne.s32.totalorder %s56, %s58
      %p62 = scmp.eq.s32.totalorder %s22, 0
      %p63 = por %p61, %p62
      %p64 = scmp.ne.s32.totalorder %s56, %s58
      %p65 = scmp.eq.s32.totalorder %s27, 1
      %p66 = por %p64, %p65
      %p67 = scmp.ne.s32.totalorder %s58, %s59
      %p68 = scmp.eq.s32.totalorder %s27, 0
      %p69 = por %p67, %p68
      %p70 = scmp.ne.s32.totalorder %s58, %s59
      %p71 = scmp.eq.s32.totalorder %s28, 1
      %p72 = por %p70, %p71
      %p74 = scmp.ne.s32.totalorder %s59, %s73
      %p75 = scmp.eq.s32.totalorder %s28, 0
      %p76 = por %p74, %p75
      %s78 = sadd.s32 %s77, 1
      %p81 = scmp.eq.s32.totalorder %s22, 1
      %p82 = scmp.ne.s32.totalorder %s77, %s79
      %p83 = scmp.eq.s32.totalorder %s22, 0
      %p84 = por %p82, %p83
      %p85 = scmp.ne.s32.totalorder %s77, %s79
      %p86 = scmp.eq.s32.totalorder %s27, 1
      %p87 = por %p85, %p86
      %p88 = scmp.ne.s32.totalorder %s79, %s80
      %p89 = scmp.eq.s32.totalorder %s27, 0
      %p90 = por %p88, %p89
      %p91 = scmp.ne.s32.totalorder %s79, %s80
      %p92 = scmp.eq.s32.totalorder %s28, 1
      %p93 = por %p91, %p92
      %p95 = scmp.ne.s32.totalorder %s80, %s94
      %p96 = scmp.eq.s32.totalorder %s28, 0
      %p97 = por %p95, %p96
      %s99 = sadd.s32 %s98, 1
      %p102 = scmp.eq.s32.totalorder %s22, 1
      %p103 = scmp.ne.s32.totalorder %s98, %s100
      %p104 = scmp.eq.s32.totalorder %s22, 0
      %p105 = por %p103, %p104
      %p106 = scmp.ne.s32.totalorder %s98, %s100
      %p107 = scmp.eq.s32.totalorder %s27, 1
      %p108 = por %p106, %p107
      %p109 = scmp.ne.s32.totalorder %s100, %s101
      %p110 = scmp.eq.s32.totalorder %s27, 0
      %p111 = por %p109, %p110
      %p112 = scmp.ne.s32.totalorder %s100, %s101
      %p113 = scmp.eq.s32.totalorder %s28, 1
      %p114 = por %p112, %p113
      %p116 = scmp.ne.s32.totalorder %s101, %s115
      %p117 = scmp.eq.s32.totalorder %s28, 0
      %p118 = por %p116, %p117
      %s120 = sadd.s32 %s119, 1
      %p123 = scmp.eq.s32.totalorder %s22, 1
      %p124 = scmp.ne.s32.totalorder %s119, %s121
      %p125 = scmp.eq.s32.totalorder %s22, 0
      %p126 = por %p124, %p125
      %p127 = scmp.ne.s32.totalorder %s119, %s121
      %p128 = scmp.eq.s32.totalorder %s27, 1
      %p129 = por %p127, %p128
      %p130 = scmp.ne.s32.totalorder %s121, %s122
      %p131 = scmp.eq.s32.totalorder %s27, 0
      %p132 = por %p130, %p131
      %p133 = scmp.ne.s32.totalorder %s121, %s122
      %p134 = scmp.eq.s32.totalorder %s28, 1
      %p135 = por %p133, %p134
      %p137 = scmp.ne.s32.totalorder %s122, %s136
      %p138 = scmp.eq.s32.totalorder %s28, 0
      %p139 = por %p137, %p138
      %s141 = sadd.s32 %s140, 1
      %p144 = scmp.eq.s32.totalorder %s22, 1
      %p145 = scmp.ne.s32.totalorder %s140, %s142
      %p146 = scmp.eq.s32.totalorder %s22, 0
      %p147 = por %p145, %p146
      %p148 = scmp.ne.s32.totalorder %s140, %s142
      %p149 = scmp.eq.s32.totalorder %s27, 1
      %p150 = por %p148, %p149
      %p151 = scmp.ne.s32.totalorder %s142, %s143
      %p152 = scmp.eq.s32.totalorder %s27, 0
      %p153 = por %p151, %p152
      %p154 = scmp.ne.s32.totalorder %s142, %s143
      %p155 = scmp.eq.s32.totalorder %s28, 1
      %p156 = por %p154, %p155
      %p158 = scmp.ne.s32.totalorder %s143, %s157
      %p159 = scmp.eq.s32.totalorder %s28, 0
      %p160 = por %p158, %p159
      %s162 = sadd.s32 %s161, 1
      %p165 = scmp.eq.s32.totalorder %s22, 1
      %p166 = scmp.ne.s32.totalorder %s161, %s163
      %p167 = scmp.eq.s32.totalorder %s22, 0
      %p168 = por %p166, %p167
      %p169 = scmp.ne.s32.totalorder %s161, %s163
      %p170 = scmp.eq.s32.totalorder %s27, 1
      %p171 = por %p169, %p170
      %p172 = scmp.ne.s32.totalorder %s163, %s164
      %p173 = scmp.eq.s32.totalorder %s27, 0
      %p174 = por %p172, %p173
      %p175 = scmp.ne.s32.totalorder %s163, %s164
      %p176 = scmp.eq.s32.totalorder %s28, 1
      %p177 = por %p175, %p176
      %p179 = scmp.ne.s32.totalorder %s164, %s178
      %p180 = scmp.eq.s32.totalorder %s28, 0
      %p181 = por %p179, %p180
      %s183 = sadd.s32 %s182, 1
      %p186 = scmp.eq.s32.totalorder %s22, 1
      %p187 = scmp.ne.s32.totalorder %s182, %s184
      %p188 = scmp.eq.s32.totalorder %s22, 0
      %p189 = por %p187, %p188
      %p190 = scmp.ne.s32.totalorder %s182, %s184
      %p191 = scmp.eq.s32.totalorder %s27, 1
      %p192 = por %p190, %p191
      %p193 = scmp.ne.s32.totalorder %s184, %s185
      %p194 = scmp.eq.s32.totalorder %s27, 0
      %p195 = por %p193, %p194
      %p196 = scmp.ne.s32.totalorder %s184, %s185
      %p197 = scmp.eq.s32.totalorder %s28, 1
      %p198 = por %p196, %p197
      %p200 = scmp.ne.s32.totalorder %s185, %s199
      %p201 = scmp.eq.s32.totalorder %s28, 0
      %p202 = por %p200, %p201
      %s203 = ssub.s32 %s22, %s29
      %p204 = scmp.eq.s32.totalorder %s203, 0
      %s206 = sadd.s32 %s205, 1
      %s207 = scalar_select %p204, %s205, %s206
      %p210 = pneg %p204
      %p211 = scmp.eq.s32.totalorder %s22, 1
      %p212 = por %p210, %p211
      %p213 = scmp.ne.s32.totalorder %s205, %s208
      %p214 = scmp.eq.s32.totalorder %s22, 0
      %p215 = por %p213, %p214
      %p216 = scmp.ne.s32.totalorder %s205, %s208
      %p217 = scmp.eq.s32.totalorder %s27, 1
      %p218 = por %p216, %p217
      %p219 = scmp.ne.s32.totalorder %s208, %s209
      %p220 = scmp.eq.s32.totalorder %s27, 0
      %p221 = por %p219, %p220
      %p222 = scmp.ne.s32.totalorder %s208, %s209
      %p223 = scmp.eq.s32.totalorder %s28, 1
      %p224 = por %p222, %p223
      %p226 = scmp.ne.s32.totalorder %s209, %s225
      %p227 = scmp.eq.s32.totalorder %s28, 0
      %p228 = por %p226, %p227
      %p229 = scmp.le.s32.totalorder 1, %s22
      %p230 = scmp.lt.s32.totalorder %s22, 3
      %p231 = pnand %p229, %p230
      %p232 = pneg %p231
      // Predicated region
      $region9: #{tpu_custom_call.1} parent=5 // pred_check
        _
      $region10: #{tpu_custom_call.1} parent=5 // pred_check_branch
        %234 = sbr.rel (%p231) target = $region12
      $region11: #{tpu_custom_call.1} parent=5 // pred_region
        %s235 = ssub.s32 %s22, 1
        // Predicated region
        $region13: #{tpu_custom_call.1} parent=11 // pred_check
          %p236 = pneg %p69
        $region14: #{tpu_custom_call.1} parent=11 // pred_check_branch
          %238 = sbr.rel (%p236) target = $region16
        $region15: #{tpu_custom_call.1} parent=11 // pred_region
          _
        $region16: #{tpu_custom_call.1} parent=11 // pred_fallthru
          _
        // Predicated region
        $region17: #{tpu_custom_call.1} parent=11 // pred_check
          %p239 = pneg %p90
        $region18: #{tpu_custom_call.1} parent=11 // pred_check_branch
          %241 = sbr.rel (%p239) target = $region20
        $region19: #{tpu_custom_call.1} parent=11 // pred_region
          _
        $region20: #{tpu_custom_call.1} parent=11 // pred_fallthru
          _
        // Predicated region
        $region21: #{tpu_custom_call.1} parent=11 // pred_check
          %p242 = pneg %p111
        $region22: #{tpu_custom_call.1} parent=11 // pred_check_branch
          %244 = sbr.rel (%p242) target = $region24
        $region23: #{tpu_custom_call.1} parent=11 // pred_region
          %s246 = ssub.s32 256, 256
          %247 = vsyncadd [#allocation7], %s246
          %s248 = sshll.u32 [#allocation6], 4
          %s249 = int_to_ptr.vmem [resolvable:$true] %s248
          %254 = dma.hbm_to_vmem [thread:$0]  %s3, 256, %s249, [#allocation7], 64, 64, 4
        $region24: #{tpu_custom_call.1} parent=11 // pred_fallthru
          _
        // Predicated region
        $region25: #{tpu_custom_call.1} parent=11 // pred_check
          %p255 = pneg %p132
        $region26: #{tpu_custom_call.1} parent=11 // pred_check_branch
          %257 = sbr.rel (%p255) target = $region28
        $region27: #{tpu_custom_call.1} parent=11 // pred_region
          %s259 = ssub.s32 16, 16
          %260 = vsyncadd [#allocation7], %s259
          %s262 = sshll.u32 [#allocation8], 4
          %s263 = int_to_ptr.vmem [resolvable:$true] %s262
          %265 = dma.hbm_to_vmem [thread:$0]  %s4, 16, %s263, [#allocation7]
        $region28: #{tpu_custom_call.1} parent=11 // pred_fallthru
          _
        // Predicated region
        $region29: #{tpu_custom_call.1} parent=11 // pred_check
          %p266 = pneg %p153
        $region30: #{tpu_custom_call.1} parent=11 // pred_check_branch
          %268 = sbr.rel (%p266) target = $region32
        $region31: #{tpu_custom_call.1} parent=11 // pred_region
          _
        $region32: #{tpu_custom_call.1} parent=11 // pred_fallthru
          _
        // Predicated region
        $region33: #{tpu_custom_call.1} parent=11 // pred_check
          %p269 = pneg %p174
        $region34: #{tpu_custom_call.1} parent=11 // pred_check_branch
          %271 = sbr.rel (%p269) target = $region36
        $region35: #{tpu_custom_call.1} parent=11 // pred_region
          %s273 = ssub.s32 16, 16
          %274 = vsyncadd [#allocation10], %s273
          %s276 = sshll.u32 [#allocation9], 4
          %s277 = int_to_ptr.vmem [resolvable:$true] %s276
          %279 = dma.hbm_to_vmem [thread:$0]  %s6, 16, %s277, [#allocation10]
        $region36: #{tpu_custom_call.1} parent=11 // pred_fallthru
          _
        // Predicated region
        $region37: #{tpu_custom_call.1} parent=11 // pred_check
          %p280 = pneg %p195
        $region38: #{tpu_custom_call.1} parent=11 // pred_check_branch
          %282 = sbr.rel (%p280) target = $region40
        $region39: #{tpu_custom_call.1} parent=11 // pred_region
          _
        $region40: #{tpu_custom_call.1} parent=11 // pred_fallthru
          _
      $region12: #{tpu_custom_call.1} parent=5 // pred_fallthru
        _
      %p283 = scmp.lt.s32.totalorder %s22, 2
      // Predicated region
      $region41: #{tpu_custom_call.1} parent=5 // pred_check
        %p284 = pneg %p283
      $region42: #{tpu_custom_call.1} parent=5 // pred_check_branch
        %286 = sbr.rel (%p284) target = $region44
      $region43: #{tpu_custom_call.1} parent=5 // pred_region
        // Predicated region
        $region45: #{tpu_custom_call.1} parent=43 // pred_check
          %p287 = pneg %p42
        $region46: #{tpu_custom_call.1} parent=43 // pred_check_branch
          %289 = sbr.rel (%p287) target = $region48
        $region47: #{tpu_custom_call.1} parent=43 // pred_region
          %s290 = sand.u32 %s32, 1
          %s291 = scalar_lea.sflag [#allocation4], %s290
          %s292 = sand.u32 %s32, 1
          %s293 = smul.addr %s292, 8
          %s294 = scalar_lea.vmem [#allocation3], %s293
          %s296 = ssub.s32 128, 128
          %297 = vsyncadd %s291, %s296
          %s298 = smul.addr %s22, 128
          %s299 = scalar_lea.hbm %s0, %s298
          %s301 = sshll.u32 %s294, 4
          %s302 = int_to_ptr.vmem [resolvable:$true] %s301
          %304 = dma.hbm_to_vmem [thread:$0]  %s299, 128, %s302, %s291
        $region48: #{tpu_custom_call.1} parent=43 // pred_fallthru
          _
      $region44: #{tpu_custom_call.1} parent=5 // pred_fallthru
        _
      %p305 = scmp.le.s32.totalorder 1, %s22
      %p306 = scmp.lt.s32.totalorder %s22, 3
      %p307 = pnand %p305, %p306
      %p308 = pneg %p307
      // Predicated region
      $region49: #{tpu_custom_call.1} parent=5 // pred_check
        _
      $region50: #{tpu_custom_call.1} parent=5 // pred_check_branch
        %310 = sbr.rel (%p307) target = $region52
      $region51: #{tpu_custom_call.1} parent=5 // pred_region
        %s311 = ssub.s32 %s22, 1
        %s312 = sand.u32 %s35, 1
        %s313 = scalar_lea.sflag [#allocation4], %s312
        %s314 = sand.u32 %s35, 1
        %s315 = smul.addr %s314, 8
        %s316 = scalar_lea.vmem [#allocation3], %s315
        // Predicated region
        $region53: #{tpu_custom_call.1} parent=51 // pred_check
          %p317 = pneg %p48
        $region54: #{tpu_custom_call.1} parent=51 // pred_check_branch
          %319 = sbr.rel (%p317) target = $region56
        $region55: #{tpu_custom_call.1} parent=51 // pred_region
          %320 = dma.done %s313, 128
        $region56: #{tpu_custom_call.1} parent=51 // pred_fallthru
          _
        // Predicated region
        $region57: #{tpu_custom_call.1} parent=51 // pred_check
          %p321 = pneg %p111
        $region58: #{tpu_custom_call.1} parent=51 // pred_check_branch
          %323 = sbr.rel (%p321) target = $region60
        $region59: #{tpu_custom_call.1} parent=51 // pred_region
          %324 = dma.done [#allocation7], 256
        $region60: #{tpu_custom_call.1} parent=51 // pred_fallthru
          _
        // Predicated region
        $region61: #{tpu_custom_call.1} parent=51 // pred_check
          %p325 = pneg %p132
        $region62: #{tpu_custom_call.1} parent=51 // pred_check_branch
          %327 = sbr.rel (%p325) target = $region64
        $region63: #{tpu_custom_call.1} parent=51 // pred_region
          %328 = dma.done [#allocation7], 16
        $region64: #{tpu_custom_call.1} parent=51 // pred_fallthru
          _
        // Predicated region
        $region65: #{tpu_custom_call.1} parent=51 // pred_check
          %p329 = pneg %p174
        $region66: #{tpu_custom_call.1} parent=51 // pred_check_branch
          %331 = sbr.rel (%p329) target = $region68
        $region67: #{tpu_custom_call.1} parent=51 // pred_region
          %332 = dma.done [#allocation10], 16
        $region68: #{tpu_custom_call.1} parent=51 // pred_fallthru
          _
        %s333 = sand.u32 %s35, 1
        %s334 = scalar_lea.sflag [#allocation4], %s333
        %s335 = sand.u32 %s35, 1
        %s336 = smul.addr %s335, 8
        %s337 = scalar_lea.vmem [#allocation3], %s336
        %p338 = pneg %p48
        %p339 = pneg %p45
        %p340 = pneg %p69
        %p341 = pneg %p66
        %p342 = pneg %p90
        %p343 = pneg %p87
        %p344 = pneg %p111
        %p345 = pneg %p108
        %p346 = pneg %p132
        %p347 = pneg %p129
        %p348 = pneg %p153
        %p349 = pneg %p150
        %p350 = pneg %p174
        %p351 = pneg %p171
        %p352 = pneg %p195
        %p353 = pneg %p192
        %p354 = pneg %p221
        %p355 = pneg %p218
        %s356 = sand.u32 %s208, 1
        %s357 = scalar_lea.sflag [#allocation5], %s356
        %s358 = sand.u32 %s208, 1
        %s359 = smul.addr %s358, 8
        %s360 = scalar_lea.vmem [#allocation11], %s359
        %v362 = vld [vmem:[%s316] sm:$0xff]
        %v363 = vld [vmem:[%s1] sm:$0x1]
        %v364 = vld [vmem:[%s2] sm:$0x1]
        %vm365 = vcmask 261120
        %v366 = vsel %vm365, %v362, 0.0
        %367 = vadd.xlane.f32.xlu0 %v366
        %v368 = vpop.xlane.xlu0 %367
        %v369 = vrcp.pop 32.0
        %v370 = vmul.f32 %v368, %v369
        %v371 = vsub.f32 %v362, %v370
        %v372 = vmul.f32 %v371, %v371
        %v373 = vsel %vm365, %v372, 0.0
        %374 = vadd.xlane.f32.xlu0 %v373
        %v375 = vpop.xlane.xlu0 %374
        %v376 = vmul.f32 %v375, 0.032258064
        %v377 = vrsqrt.pop %v376
        %v378 = vmul.f32 %v376, %v377
        %vm379 = vcmp.eq.f32.partialorder %v376, inf
        %v380 = vsel %vm379, %v376, %v378
        %vm381 = vcmp.eq.f32.partialorder %v376, 0.0
        %v382 = vand.u32 %v376, 2147483648
        %v383 = vsel %vm381, %v382, %v380
        %v384 = vadd.f32 %v383, 1e-06
        %v385 = vrcp.pop %v384
        %v386 = vmul.f32 1.0, %v385
        %v388 = vlaneseq
        %v389 = vshrl.u32 %v388, 7
        %v390 = vsub.s32 0, %v389
        %v391 = vrot.slane %v363, %v390
        %v393 = vmul.f32 %v391, %v371
        %v394 = vmul.f32 %v393, %v386
        %v396 = vlaneseq
        %v397 = vshrl.u32 %v396, 7
        %v398 = vsub.s32 0, %v397
        %v399 = vrot.slane %v364, %v398
        %v401 = vadd.f32 %v394, %v399
        %v402 = vpack.c.bf16 %v401, %v401
        %v403 = vld [vmem:[#allocation6] sm:$0xf]
        %v404 = vld [vmem:[#allocation6 + $0x4] sm:$0xf]
        %v405 = vld [vmem:[#allocation6 + $0x8] sm:$0xf]
        %v406 = vld [vmem:[#allocation6 + $0xc] sm:$0xf]
        %v407 = vld [vmem:[#allocation8] sm:$0x1]
        %v409 = vlaneseq
        %v410 = vshrl.u32 %v409, 7
        %v411 = vsub.s32 0, %v410
        %v412 = vrot.slane %v407, %v411
        %v418 = vunpack.c.l.b16 %v403
        %v419 = vunpack.c.l.b16 %v404
        %v420 = vunpack.c.l.b16 %v405
        %v421 = vunpack.c.l.b16 %v406
        %v422 = vpack.c.b16 %v419, %v418
        %v423 = vpack.c.b16 %v421, %v420
        %v427 = vsel %vm365, %v402, 0
        %429 = vmatprep.subr.bf16.mxu0 0
        %430 = vmatpush1.bf16.msra.mxu0 %v422
        %431 = vmatprep.subr.bf16.mxu0 0
        %432 = vmatpush1.bf16.msra.mxu0 %v423
        %433 = vmatprep.subr.bf16.mxu0 0
        %434 = vmatpush1.bf16.msra.mxu0 0
        %435 = vmatprep.subr.bf16.mxu0 0
        %436 = vmatpush1.bf16.msra.mxu0 0
        %437 = vmatprep.subr.bf16.mxu0 0
        %438 = vmatpush1.bf16.msra.mxu0 0
        %439 = vmatprep.subr.bf16.mxu0 0
        %440 = vmatpush1.bf16.msra.mxu0 0
        %441 = vmatprep.subr.bf16.mxu0 0
        %442 = vmatpush1.bf16.msra.mxu0 0
        %443 = vmatprep.subr.bf16.mxu0 0
        %444 = vmatpush1.bf16.msra.mxu0 0
        %445 = vmatprep.subr.bf16.mxu0 0
        %446 = vmatpush1.bf16.msra.mxu0 0
        %447 = vmatprep.subr.bf16.mxu0 0
        %448 = vmatpush1.bf16.msra.mxu0 0
        %449 = vmatprep.subr.bf16.mxu0 0
        %450 = vmatpush1.bf16.msra.mxu0 0
        %451 = vmatprep.subr.bf16.mxu0 0
        %452 = vmatpush1.bf16.msra.mxu0 0
        %453 = vmatprep.subr.bf16.mxu0 0
        %454 = vmatpush1.bf16.msra.mxu0 0
        %455 = vmatprep.subr.bf16.mxu0 0
        %456 = vmatpush1.bf16.msra.mxu0 0
        %457 = vmatprep.subr.bf16.mxu0 0
        %458 = vmatpush1.bf16.msra.mxu0 0
        %459 = vmatprep.subr.bf16.mxu0 0
        %460 = vmatpush1.bf16.msra.mxu0 0
        %461 = vmatprep.mubr.bf16.mxu0 0
        %462 = vmatmul.mubr.bf16.gmra.mrb[0].mxu0 %v427
        %v463 = vpop.f32.mrb[0].mxu0
        %v464 = vadd.f32 %v412, %v463
        %v465 = vpop.f32.mrb[0].mxu0
        %v466 = vpop.f32.mrb[0].mxu0
        %v467 = vpop.f32.mrb[0].mxu0
        %468 = vdwg.mxu0
        %v469 = vpack.c.bf16 %v464, %v464
        %v470 = vld [vmem:[%s7] sm:$0xff]
        %472 = vrot.lane.b32.xlu0 %v469, 96
        %v473 = vpop.permute.xlu0 %472
        %vm474 = vcmask 64512
        %v476 = vsel %vm474, %v469, 0
        %v479 = vsel %vm474, %v473, 0
        %481 = vmatprep.subr.bf16.mxu0 0
        %482 = vmatpush1.bf16.xpose.msra.mxu0 %v479
        %483 = vmatprep.subr.bf16.mxu0 0
        %484 = vmatpush1.bf16.xpose.msra.mxu0 0
        %485 = vmatprep.subr.bf16.mxu0 0
        %486 = vmatpush1.bf16.xpose.msra.mxu0 0
        %487 = vmatprep.subr.bf16.mxu0 0
        %488 = vmatpush1.bf16.xpose.msra.mxu0 0
        %489 = vmatprep.subr.bf16.mxu0 0
        %490 = vmatpush1.bf16.xpose.msra.mxu0 0
        %491 = vmatprep.subr.bf16.mxu0 0
        %492 = vmatpush1.bf16.xpose.msra.mxu0 0
        %493 = vmatprep.subr.bf16.mxu0 0
        %494 = vmatpush1.bf16.xpose.msra.mxu0 0
        %495 = vmatprep.subr.bf16.mxu0 0
        %496 = vmatpush1.bf16.xpose.msra.mxu0 0
        %497 = vmatprep.subr.bf16.mxu0 0
        %498 = vmatpush1.bf16.xpose.msra.mxu0 0
        %499 = vmatprep.subr.bf16.mxu0 0
        %500 = vmatpush1.bf16.xpose.msra.mxu0 0
        %501 = vmatprep.subr.bf16.mxu0 0
        %502 = vmatpush1.bf16.xpose.msra.mxu0 0
        %503 = vmatprep.subr.bf16.mxu0 0
        %504 = vmatpush1.bf16.xpose.msra.mxu0 0
        %505 = vmatprep.subr.bf16.mxu0 0
        %506 = vmatpush1.bf16.xpose.msra.mxu0 0
        %507 = vmatprep.subr.bf16.mxu0 0
        %508 = vmatpush1.bf16.xpose.msra.mxu0 0
        %509 = vmatprep.subr.bf16.mxu0 0
        %510 = vmatpush1.bf16.xpose.msra.mxu0 0
        %511 = vmatprep.subr.bf16.mxu0 0
        %512 = vmatpush1.bf16.xpose.msra.mxu0 0
        %513 = vmatprep.mubr.bf16.mxu0 0
        %514 = vmatmul.mubr.bf16.gmra.mrb[0].mxu0 %v476
        %v515 = vpop.f32.mrb[0].mxu0
        %v516 = vadd.f32 %v470, %v515
        %v517 = vpop.f32.mrb[0].mxu0
        %v518 = vpop.f32.mrb[0].mxu0
        %v519 = vpop.f32.mrb[0].mxu0
        %520 = vdwg.mxu0
        %v521 = vsel %vm474, %v516, -inf
        %522 = vmax.xlane.f32.xlu0 %v521
        %v523 = vpop.xlane.xlu0 %522
        %v524 = vsub.f32 %v516, %v523
        %v525 = vmul.f32 %v524, 1.442695
        %v526 = vpow.pop %v525
        %v527 = vsel %vm474, %v526, 0.0
        %528 = vadd.xlane.f32.xlu0 %v527
        %v529 = vpop.xlane.xlu0 %528
        %v530 = vrcp.pop %v529
        %v531 = vmul.f32 %v526, %v530
        %v532 = vpack.c.bf16 %v531, %v531
        %533 = vrot.lane.b32.xlu0 %v469, 64
        %v534 = vpop.permute.xlu0 %533
        %v536 = vsel %vm474, %v532, 0
        %vm538 = vcmask 1043456
        %v540 = vsel %vm538, %v534, 0
        %542 = vmatprep.subr.bf16.mxu0 0
        %543 = vmatpush1.bf16.msra.mxu0 %v540
        %544 = vmatprep.subr.bf16.mxu0 0
        %545 = vmatpush1.bf16.msra.mxu0 0
        %546 = vmatprep.subr.bf16.mxu0 0
        %547 = vmatpush1.bf16.msra.mxu0 0
        %548 = vmatprep.subr.bf16.mxu0 0
        %549 = vmatpush1.bf16.msra.mxu0 0
        %550 = vmatprep.subr.bf16.mxu0 0
        %551 = vmatpush1.bf16.msra.mxu0 0
        %552 = vmatprep.subr.bf16.mxu0 0
        %553 = vmatpush1.bf16.msra.mxu0 0
        %554 = vmatprep.subr.bf16.mxu0 0
        %555 = vmatpush1.bf16.msra.mxu0 0
        %556 = vmatprep.subr.bf16.mxu0 0
        %557 = vmatpush1.bf16.msra.mxu0 0
        %558 = vmatprep.subr.bf16.mxu0 0
        %559 = vmatpush1.bf16.msra.mxu0 0
        %560 = vmatprep.subr.bf16.mxu0 0
        %561 = vmatpush1.bf16.msra.mxu0 0
        %562 = vmatprep.subr.bf16.mxu0 0
        %563 = vmatpush1.bf16.msra.mxu0 0
        %564 = vmatprep.subr.bf16.mxu0 0
        %565 = vmatpush1.bf16.msra.mxu0 0
        %566 = vmatprep.subr.bf16.mxu0 0
        %567 = vmatpush1.bf16.msra.mxu0 0
        %568 = vmatprep.subr.bf16.mxu0 0
        %569 = vmatpush1.bf16.msra.mxu0 0
        %570 = vmatprep.subr.bf16.mxu0 0
        %571 = vmatpush1.bf16.msra.mxu0 0
        %572 = vmatprep.subr.bf16.mxu0 0
        %573 = vmatpush1.bf16.msra.mxu0 0
        %574 = vmatprep.mubr.bf16.mxu0 0
        %575 = vmatmul.mubr.bf16.gmra.mrb[0].mxu0 %v536
        %v576 = vpop.f32.mrb[0].mxu0
        %v577 = vadd.f32 0.0, %v576
        %v578 = vpop.f32.mrb[0].mxu0
        %v579 = vpop.f32.mrb[0].mxu0
        %v580 = vpop.f32.mrb[0].mxu0
        %581 = vdwg.mxu0
        %582 = vst.msk [vmem:[#allocation2] sm:$0xff] %vm474, %v577
        %583 = vrot.lane.b32.xlu0 %v469, 120
        %v584 = vpop.permute.xlu0 %583
        %585 = vrot.lane.b32.xlu0 %v469, 88
        %v586 = vpop.permute.xlu0 %585
        %v588 = vsel %vm474, %v584, 0
        %v591 = vsel %vm474, %v586, 0
        %593 = vmatprep.subr.bf16.mxu0 0
        %594 = vmatpush1.bf16.xpose.msra.mxu0 %v591
        %595 = vmatprep.subr.bf16.mxu0 0
        %596 = vmatpush1.bf16.xpose.msra.mxu0 0
        %597 = vmatprep.subr.bf16.mxu0 0
        %598 = vmatpush1.bf16.xpose.msra.mxu0 0
        %599 = vmatprep.subr.bf16.mxu0 0
        %600 = vmatpush1.bf16.xpose.msra.mxu0 0
        %601 = vmatprep.subr.bf16.mxu0 0
        %602 = vmatpush1.bf16.xpose.msra.mxu0 0
        %603 = vmatprep.subr.bf16.mxu0 0
        %604 = vmatpush1.bf16.xpose.msra.mxu0 0
        %605 = vmatprep.subr.bf16.mxu0 0
        %606 = vmatpush1.bf16.xpose.msra.mxu0 0
        %607 = vmatprep.subr.bf16.mxu0 0
        %608 = vmatpush1.bf16.xpose.msra.mxu0 0
        %609 = vmatprep.subr.bf16.mxu0 0
        %610 = vmatpush1.bf16.xpose.msra.mxu0 0
        %611 = vmatprep.subr.bf16.mxu0 0
        %612 = vmatpush1.bf16.xpose.msra.mxu0 0
        %613 = vmatprep.subr.bf16.mxu0 0
        %614 = vmatpush1.bf16.xpose.msra.mxu0 0
        %615 = vmatprep.subr.bf16.mxu0 0
        %616 = vmatpush1.bf16.xpose.msra.mxu0 0
        %617 = vmatprep.subr.bf16.mxu0 0
        %618 = vmatpush1.bf16.xpose.msra.mxu0 0
        %619 = vmatprep.subr.bf16.mxu0 0
        %620 = vmatpush1.bf16.xpose.msra.mxu0 0
        %621 = vmatprep.subr.bf16.mxu0 0
        %622 = vmatpush1.bf16.xpose.msra.mxu0 0
        %623 = vmatprep.subr.bf16.mxu0 0
        %624 = vmatpush1.bf16.xpose.msra.mxu0 0
        %625 = vmatprep.mubr.bf16.mxu0 0
        %626 = vmatmul.mubr.bf16.gmra.mrb[0].mxu0 %v588
        %v627 = vpop.f32.mrb[0].mxu0
        %v628 = vadd.f32 %v470, %v627
        %v629 = vpop.f32.mrb[0].mxu0
        %v630 = vpop.f32.mrb[0].mxu0
        %v631 = vpop.f32.mrb[0].mxu0
        %632 = vdwg.mxu0
        %v633 = vsel %vm474, %v628, -inf
        %634 = vmax.xlane.f32.xlu0 %v633
        %v635 = vpop.xlane.xlu0 %634
        %v636 = vsub.f32 %v628, %v635
        %v637 = vmul.f32 %v636, 1.442695
        %v638 = vpow.pop %v637
        %v639 = vsel %vm474, %v638, 0.0
        %640 = vadd.xlane.f32.xlu0 %v639
        %v641 = vpop.xlane.xlu0 %640
        %v642 = vrcp.pop %v641
        %v643 = vmul.f32 %v638, %v642
        %v644 = vpack.c.bf16 %v643, %v643
        %645 = vrot.lane.b32.xlu0 %v469, 56
        %v646 = vpop.permute.xlu0 %645
        %v648 = vsel %vm474, %v644, 0
        %v651 = vsel %vm538, %v646, 0
        %653 = vmatprep.subr.bf16.mxu0 0
        %654 = vmatpush1.bf16.msra.mxu0 %v651
        %655 = vmatprep.subr.bf16.mxu0 0
        %656 = vmatpush1.bf16.msra.mxu0 0
        %657 = vmatprep.subr.bf16.mxu0 0
        %658 = vmatpush1.bf16.msra.mxu0 0
        %659 = vmatprep.subr.bf16.mxu0 0
        %660 = vmatpush1.bf16.msra.mxu0 0
        %661 = vmatprep.subr.bf16.mxu0 0
        %662 = vmatpush1.bf16.msra.mxu0 0
        %663 = vmatprep.subr.bf16.mxu0 0
        %664 = vmatpush1.bf16.msra.mxu0 0
        %665 = vmatprep.subr.bf16.mxu0 0
        %666 = vmatpush1.bf16.msra.mxu0 0
        %667 = vmatprep.subr.bf16.mxu0 0
        %668 = vmatpush1.bf16.msra.mxu0 0
        %669 = vmatprep.subr.bf16.mxu0 0
        %670 = vmatpush1.bf16.msra.mxu0 0
        %671 = vmatprep.subr.bf16.mxu0 0
        %672 = vmatpush1.bf16.msra.mxu0 0
        %673 = vmatprep.subr.bf16.mxu0 0
        %674 = vmatpush1.bf16.msra.mxu0 0
        %675 = vmatprep.subr.bf16.mxu0 0
        %676 = vmatpush1.bf16.msra.mxu0 0
        %677 = vmatprep.subr.bf16.mxu0 0
        %678 = vmatpush1.bf16.msra.mxu0 0
        %679 = vmatprep.subr.bf16.mxu0 0
        %680 = vmatpush1.bf16.msra.mxu0 0
        %681 = vmatprep.subr.bf16.mxu0 0
        %682 = vmatpush1.bf16.msra.mxu0 0
        %683 = vmatprep.subr.bf16.mxu0 0
        %684 = vmatpush1.bf16.msra.mxu0 0
        %685 = vmatprep.mubr.bf16.mxu0 0
        %686 = vmatmul.mubr.bf16.gmra.mrb[0].mxu0 %v648
        %v687 = vpop.f32.mrb[0].mxu0
        %v688 = vadd.f32 0.0, %v687
        %v689 = vpop.f32.mrb[0].mxu0
        %v690 = vpop.f32.mrb[0].mxu0
        %v691 = vpop.f32.mrb[0].mxu0
        %692 = vdwg.mxu0
        %694 = vrot.lane.b32.xlu0 %v688, 8
        %v695 = vpop.permute.xlu0 %694
        %vm697 = vcmask 130112
        %698 = vst.msk [vmem:[#allocation2] sm:$0xff] %vm697, %v695
        %699 = vrot.lane.b32.xlu0 %v469, 112
        %v700 = vpop.permute.xlu0 %699
        %701 = vrot.lane.b32.xlu0 %v469, 80
        %v702 = vpop.permute.xlu0 %701
        %v704 = vsel %vm474, %v700, 0
        %v707 = vsel %vm474, %v702, 0
        %709 = vmatprep.subr.bf16.mxu0 0
        %710 = vmatpush1.bf16.xpose.msra.mxu0 %v707
        %711 = vmatprep.subr.bf16.mxu0 0
        %712 = vmatpush1.bf16.xpose.msra.mxu0 0
        %713 = vmatprep.subr.bf16.mxu0 0
        %714 = vmatpush1.bf16.xpose.msra.mxu0 0
        %715 = vmatprep.subr.bf16.mxu0 0
        %716 = vmatpush1.bf16.xpose.msra.mxu0 0
        %717 = vmatprep.subr.bf16.mxu0 0
        %718 = vmatpush1.bf16.xpose.msra.mxu0 0
        %719 = vmatprep.subr.bf16.mxu0 0
        %720 = vmatpush1.bf16.xpose.msra.mxu0 0
        %721 = vmatprep.subr.bf16.mxu0 0
        %722 = vmatpush1.bf16.xpose.msra.mxu0 0
        %723 = vmatprep.subr.bf16.mxu0 0
        %724 = vmatpush1.bf16.xpose.msra.mxu0 0
        %725 = vmatprep.subr.bf16.mxu0 0
        %726 = vmatpush1.bf16.xpose.msra.mxu0 0
        %727 = vmatprep.subr.bf16.mxu0 0
        %728 = vmatpush1.bf16.xpose.msra.mxu0 0
        %729 = vmatprep.subr.bf16.mxu0 0
        %730 = vmatpush1.bf16.xpose.msra.mxu0 0
        %731 = vmatprep.subr.bf16.mxu0 0
        %732 = vmatpush1.bf16.xpose.msra.mxu0 0
        %733 = vmatprep.subr.bf16.mxu0 0
        %734 = vmatpush1.bf16.xpose.msra.mxu0 0
        %735 = vmatprep.subr.bf16.mxu0 0
        %736 = vmatpush1.bf16.xpose.msra.mxu0 0
        %737 = vmatprep.subr.bf16.mxu0 0
        %738 = vmatpush1.bf16.xpose.msra.mxu0 0
        %739 = vmatprep.subr.bf16.mxu0 0
        %740 = vmatpush1.bf16.xpose.msra.mxu0 0
        %741 = vmatprep.mubr.bf16.mxu0 0
        %742 = vmatmul.mubr.bf16.gmra.mrb[0].mxu0 %v704
        %v743 = vpop.f32.mrb[0].mxu0
        %v744 = vadd.f32 %v470, %v743
        %v745 = vpop.f32.mrb[0].mxu0
        %v746 = vpop.f32.mrb[0].mxu0
        %v747 = vpop.f32.mrb[0].mxu0
        %748 = vdwg.mxu0
        %v749 = vsel %vm474, %v744, -inf
        %750 = vmax.xlane.f32.xlu0 %v749
        %v751 = vpop.xlane.xlu0 %750
        %v752 = vsub.f32 %v744, %v751
        %v753 = vmul.f32 %v752, 1.442695
        %v754 = vpow.pop %v753
        %v755 = vsel %vm474, %v754, 0.0
        %756 = vadd.xlane.f32.xlu0 %v755
        %v757 = vpop.xlane.xlu0 %756
        %v758 = vrcp.pop %v757
        %v759 = vmul.f32 %v754, %v758
        %v760 = vpack.c.bf16 %v759, %v759
        %761 = vrot.lane.b32.xlu0 %v469, 48
        %v762 = vpop.permute.xlu0 %761
        %v764 = vsel %vm474, %v760, 0
        %v767 = vsel %vm538, %v762, 0
        %769 = vmatprep.subr.bf16.mxu0 0
        %770 = vmatpush1.bf16.msra.mxu0 %v767
        %771 = vmatprep.subr.bf16.mxu0 0
        %772 = vmatpush1.bf16.msra.mxu0 0
        %773 = vmatprep.subr.bf16.mxu0 0
        %774 = vmatpush1.bf16.msra.mxu0 0
        %775 = vmatprep.subr.bf16.mxu0 0
        %776 = vmatpush1.bf16.msra.mxu0 0
        %777 = vmatprep.subr.bf16.mxu0 0
        %778 = vmatpush1.bf16.msra.mxu0 0
        %779 = vmatprep.subr.bf16.mxu0 0
        %780 = vmatpush1.bf16.msra.mxu0 0
        %781 = vmatprep.subr.bf16.mxu0 0
        %782 = vmatpush1.bf16.msra.mxu0 0
        %783 = vmatprep.subr.bf16.mxu0 0
        %784 = vmatpush1.bf16.msra.mxu0 0
        %785 = vmatprep.subr.bf16.mxu0 0
        %786 = vmatpush1.bf16.msra.mxu0 0
        %787 = vmatprep.subr.bf16.mxu0 0
        %788 = vmatpush1.bf16.msra.mxu0 0
        %789 = vmatprep.subr.bf16.mxu0 0
        %790 = vmatpush1.bf16.msra.mxu0 0
        %791 = vmatprep.subr.bf16.mxu0 0
        %792 = vmatpush1.bf16.msra.mxu0 0
        %793 = vmatprep.subr.bf16.mxu0 0
        %794 = vmatpush1.bf16.msra.mxu0 0
        %795 = vmatprep.subr.bf16.mxu0 0
        %796 = vmatpush1.bf16.msra.mxu0 0
        %797 = vmatprep.subr.bf16.mxu0 0
        %798 = vmatpush1.bf16.msra.mxu0 0
        %799 = vmatprep.subr.bf16.mxu0 0
        %800 = vmatpush1.bf16.msra.mxu0 0
        %801 = vmatprep.mubr.bf16.mxu0 0
        %802 = vmatmul.mubr.bf16.gmra.mrb[0].mxu0 %v764
        %v803 = vpop.f32.mrb[0].mxu0
        %v804 = vadd.f32 0.0, %v803
        %v805 = vpop.f32.mrb[0].mxu0
        %v806 = vpop.f32.mrb[0].mxu0
        %v807 = vpop.f32.mrb[0].mxu0
        %808 = vdwg.mxu0
        %810 = vrot.lane.b32.xlu0 %v804, 16
        %v811 = vpop.permute.xlu0 %810
        %vm813 = vcmask 195712
        %814 = vst.msk [vmem:[#allocation2] sm:$0xff] %vm813, %v811
        %815 = vrot.lane.b32.xlu0 %v469, 104
        %v816 = vpop.permute.xlu0 %815
        %817 = vrot.lane.b32.xlu0 %v469, 72
        %v818 = vpop.permute.xlu0 %817
        %v820 = vsel %vm474, %v816, 0
        %v823 = vsel %vm474, %v818, 0
        %825 = vmatprep.subr.bf16.mxu0 0
        %826 = vmatpush1.bf16.xpose.msra.mxu0 %v823
        %827 = vmatprep.subr.bf16.mxu0 0
        %828 = vmatpush1.bf16.xpose.msra.mxu0 0
        %829 = vmatprep.subr.bf16.mxu0 0
        %830 = vmatpush1.bf16.xpose.msra.mxu0 0
        %831 = vmatprep.subr.bf16.mxu0 0
        %832 = vmatpush1.bf16.xpose.msra.mxu0 0
        %833 = vmatprep.subr.bf16.mxu0 0
        %834 = vmatpush1.bf16.xpose.msra.mxu0 0
        %835 = vmatprep.subr.bf16.mxu0 0
        %836 = vmatpush1.bf16.xpose.msra.mxu0 0
        %837 = vmatprep.subr.bf16.mxu0 0
        %838 = vmatpush1.bf16.xpose.msra.mxu0 0
        %839 = vmatprep.subr.bf16.mxu0 0
        %840 = vmatpush1.bf16.xpose.msra.mxu0 0
        %841 = vmatprep.subr.bf16.mxu0 0
        %842 = vmatpush1.bf16.xpose.msra.mxu0 0
        %843 = vmatprep.subr.bf16.mxu0 0
        %844 = vmatpush1.bf16.xpose.msra.mxu0 0
        %845 = vmatprep.subr.bf16.mxu0 0
        %846 = vmatpush1.bf16.xpose.msra.mxu0 0
        %847 = vmatprep.subr.bf16.mxu0 0
        %848 = vmatpush1.bf16.xpose.msra.mxu0 0
        %849 = vmatprep.subr.bf16.mxu0 0
        %850 = vmatpush1.bf16.xpose.msra.mxu0 0
        %851 = vmatprep.subr.bf16.mxu0 0
        %852 = vmatpush1.bf16.xpose.msra.mxu0 0
        %853 = vmatprep.subr.bf16.mxu0 0
        %854 = vmatpush1.bf16.xpose.msra.mxu0 0
        %855 = vmatprep.subr.bf16.mxu0 0
        %856 = vmatpush1.bf16.xpose.msra.mxu0 0
        %857 = vmatprep.mubr.bf16.mxu0 0
        %858 = vmatmul.mubr.bf16.gmra.mrb[0].mxu0 %v820
        %v859 = vpop.f32.mrb[0].mxu0
        %v860 = vadd.f32 %v470, %v859
        %v861 = vpop.f32.mrb[0].mxu0
        %v862 = vpop.f32.mrb[0].mxu0
        %v863 = vpop.f32.mrb[0].mxu0
        %864 = vdwg.mxu0
        %v865 = vsel %vm474, %v860, -inf
        %866 = vmax.xlane.f32.xlu0 %v865
        %v867 = vpop.xlane.xlu0 %866
        %v868 = vsub.f32 %v860, %v867
        %v869 = vmul.f32 %v868, 1.442695
        %v870 = vpow.pop %v869
        %v871 = vsel %vm474, %v870, 0.0
        %872 = vadd.xlane.f32.xlu0 %v871
        %v873 = vpop.xlane.xlu0 %872
        %v874 = vrcp.pop %v873
        %v875 = vmul.f32 %v870, %v874
        %v876 = vpack.c.bf16 %v875, %v875
        %877 = vrot.lane.b32.xlu0 %v469, 40
        %v878 = vpop.permute.xlu0 %877
        %v880 = vsel %vm474, %v876, 0
        %v883 = vsel %vm538, %v878, 0
        %885 = vmatprep.subr.bf16.mxu0 0
        %886 = vmatpush1.bf16.msra.mxu0 %v883
        %887 = vmatprep.subr.bf16.mxu0 0
        %888 = vmatpush1.bf16.msra.mxu0 0
        %889 = vmatprep.subr.bf16.mxu0 0
        %890 = vmatpush1.bf16.msra.mxu0 0
        %891 = vmatprep.subr.bf16.mxu0 0
        %892 = vmatpush1.bf16.msra.mxu0 0
        %893 = vmatprep.subr.bf16.mxu0 0
        %894 = vmatpush1.bf16.msra.mxu0 0
        %895 = vmatprep.subr.bf16.mxu0 0
        %896 = vmatpush1.bf16.msra.mxu0 0
        %897 = vmatprep.subr.bf16.mxu0 0
        %898 = vmatpush1.bf16.msra.mxu0 0
        %899 = vmatprep.subr.bf16.mxu0 0
        %900 = vmatpush1.bf16.msra.mxu0 0
        %901 = vmatprep.subr.bf16.mxu0 0
        %902 = vmatpush1.bf16.msra.mxu0 0
        %903 = vmatprep.subr.bf16.mxu0 0
        %904 = vmatpush1.bf16.msra.mxu0 0
        %905 = vmatprep.subr.bf16.mxu0 0
        %906 = vmatpush1.bf16.msra.mxu0 0
        %907 = vmatprep.subr.bf16.mxu0 0
        %908 = vmatpush1.bf16.msra.mxu0 0
        %909 = vmatprep.subr.bf16.mxu0 0
        %910 = vmatpush1.bf16.msra.mxu0 0
        %911 = vmatprep.subr.bf16.mxu0 0
        %912 = vmatpush1.bf16.msra.mxu0 0
        %913 = vmatprep.subr.bf16.mxu0 0
        %914 = vmatpush1.bf16.msra.mxu0 0
        %915 = vmatprep.subr.bf16.mxu0 0
        %916 = vmatpush1.bf16.msra.mxu0 0
        %917 = vmatprep.mubr.bf16.mxu0 0
        %918 = vmatmul.mubr.bf16.gmra.mrb[0].mxu0 %v880
        %v919 = vpop.f32.mrb[0].mxu0
        %v920 = vadd.f32 0.0, %v919
        %v921 = vpop.f32.mrb[0].mxu0
        %v922 = vpop.f32.mrb[0].mxu0
        %v923 = vpop.f32.mrb[0].mxu0
        %924 = vdwg.mxu0
        %926 = vrot.lane.b32.xlu0 %v920, 24
        %v927 = vpop.permute.xlu0 %926
        %vm929 = vcmask 261312
        %930 = vst.msk [vmem:[#allocation2] sm:$0xff] %vm929, %v927
        %v931 = vld [vmem:[#allocation2] sm:$0xff]
        %v932 = vpack.c.bf16 %v931, %v931
        %v933 = vld [vmem:[%s5] sm:$0xf]
        %v934 = vld [vmem:[%s5 + $0x4] sm:$0xf]
        %v935 = vld [vmem:[%s5 + $0x8] sm:$0xf]
        %v936 = vld [vmem:[%s5 + $0xc] sm:$0xf]
        %v937 = vld [vmem:[#allocation9] sm:$0x1]
        %v939 = vlaneseq
        %v940 = vshrl.u32 %v939, 7
        %v941 = vsub.s32 0, %v940
        %v942 = vrot.slane %v937, %v941
        %v948 = vunpack.c.l.b16 %v933
        %v949 = vunpack.c.l.b16 %v934
        %v950 = vunpack.c.l.b16 %v935
        %v951 = vunpack.c.l.b16 %v936
        %v952 = vpack.c.b16 %v949, %v948
        %v953 = vpack.c.b16 %v951, %v950
        %v957 = vsel %vm365, %v932, 0
        %959 = vmatprep.subr.bf16.mxu0 0
        %960 = vmatpush1.bf16.msra.mxu0 %v952
        %961 = vmatprep.subr.bf16.mxu0 0
        %962 = vmatpush1.bf16.msra.mxu0 %v953
        %963 = vmatprep.subr.bf16.mxu0 0
        %964 = vmatpush1.bf16.msra.mxu0 0
        %965 = vmatprep.subr.bf16.mxu0 0
        %966 = vmatpush1.bf16.msra.mxu0 0
        %967 = vmatprep.subr.bf16.mxu0 0
        %968 = vmatpush1.bf16.msra.mxu0 0
        %969 = vmatprep.subr.bf16.mxu0 0
        %970 = vmatpush1.bf16.msra.mxu0 0
        %971 = vmatprep.subr.bf16.mxu0 0
        %972 = vmatpush1.bf16.msra.mxu0 0
        %973 = vmatprep.subr.bf16.mxu0 0
        %974 = vmatpush1.bf16.msra.mxu0 0
        %975 = vmatprep.subr.bf16.mxu0 0
        %976 = vmatpush1.bf16.msra.mxu0 0
        %977 = vmatprep.subr.bf16.mxu0 0
        %978 = vmatpush1.bf16.msra.mxu0 0
        %979 = vmatprep.subr.bf16.mxu0 0
        %980 = vmatpush1.bf16.msra.mxu0 0
        %981 = vmatprep.subr.bf16.mxu0 0
        %982 = vmatpush1.bf16.msra.mxu0 0
        %983 = vmatprep.subr.bf16.mxu0 0
        %984 = vmatpush1.bf16.msra.mxu0 0
        %985 = vmatprep.subr.bf16.mxu0 0
        %986 = vmatpush1.bf16.msra.mxu0 0
        %987 = vmatprep.subr.bf16.mxu0 0
        %988 = vmatpush1.bf16.msra.mxu0 0
        %989 = vmatprep.subr.bf16.mxu0 0
        %990 = vmatpush1.bf16.msra.mxu0 0
        %991 = vmatprep.mubr.bf16.mxu0 0
        %992 = vmatmul.mubr.bf16.gmra.mrb[0].mxu0 %v957
        %v993 = vpop.f32.mrb[0].mxu0
        %v994 = vadd.f32 %v942, %v993
        %v995 = vpop.f32.mrb[0].mxu0
        %v996 = vpop.f32.mrb[0].mxu0
        %v997 = vpop.f32.mrb[0].mxu0
        %998 = vdwg.mxu0
        %v999 = vadd.f32 %v994, %v362
        %1000 = vst.msk [vmem:[%s360] sm:$0xff] %vm365, %v999
        %s1001 = sand.u32 %s208, 1
        %s1002 = scalar_lea.sflag [#allocation5], %s1001
        %s1003 = sand.u32 %s208, 1
        %s1004 = smul.addr %s1003, 8
        %s1005 = scalar_lea.vmem [#allocation11], %s1004
        // Predicated region
        $region69: #{tpu_custom_call.1} parent=51 // pred_check
          %p1006 = pneg %p218
        $region70: #{tpu_custom_call.1} parent=51 // pred_check_branch
          %1008 = sbr.rel (%p1006) target = $region72
        $region71: #{tpu_custom_call.1} parent=51 // pred_region
          %s1010 = ssub.s32 128, 128
          %1011 = vsyncadd %s1002, %s1010
          %s1012 = smul.addr %s27, 128
          %s1013 = scalar_lea.hbm %s8, %s1012
          %s1015 = sshll.u32 %s1005, 4
          %s1016 = int_to_ptr.vmem [resolvable:$true] %s1015
          %1018 = dma.vmem_to_hbm [thread:$0]  %s1016, 128, %s1013, %s1002
        $region72: #{tpu_custom_call.1} parent=51 // pred_fallthru
          _
      $region52: #{tpu_custom_call.1} parent=5 // pred_fallthru
        _
      %p1019 = scmp.le.s32.totalorder 2, %s22
      // Predicated region
      $region73: #{tpu_custom_call.1} parent=5 // pred_check
        %p1020 = pneg %p1019
      $region74: #{tpu_custom_call.1} parent=5 // pred_check_branch
        %1022 = sbr.rel (%p1020) target = $region76
      $region75: #{tpu_custom_call.1} parent=5 // pred_region
        %s1023 = ssub.s32 %s22, 2
        // Predicated region
        $region77: #{tpu_custom_call.1} parent=75 // pred_check
          %p1024 = pneg %p224
        $region78: #{tpu_custom_call.1} parent=75 // pred_check_branch
          %1026 = sbr.rel (%p1024) target = $region80
        $region79: #{tpu_custom_call.1} parent=75 // pred_region
          %s1027 = sand.u32 %s209, 1
          %s1028 = scalar_lea.sflag [#allocation5], %s1027
          %s1029 = sand.u32 %s209, 1
          %s1030 = smul.addr %s1029, 8
          %s1031 = scalar_lea.vmem [#allocation11], %s1030
          %1032 = dma.done %s1028, 128
        $region80: #{tpu_custom_call.1} parent=75 // pred_fallthru
          _
      $region76: #{tpu_custom_call.1} parent=5 // pred_fallthru
        _
    $region6: #{tpu_custom_call.1} parent=1 // loop_footer
      %s26 = sadd.s32 1, %s22
    $region7: #{tpu_custom_call.1} parent=1 // loop_footer_branch
      %21 = sbr.rel target = $region3
    $region8: #{tpu_custom_call.1} parent=1 // loop_exit
      _
    %1033 = vsyncpa [#allocation4], 1
    %s1034 = scalar_lea.sflag [#allocation4], 1
    %1035 = vsyncpa %s1034, 1
    %1036 = vsyncpa [#allocation7], 1
    %1037 = vsyncpa [#allocation10], 1
    %1038 = vsyncpa [#allocation5], 1
    %s1039 = scalar_lea.sflag [#allocation5], 1
    %1040 = vsyncpa %s1039, 1

</llo_original>
